<compile_context>
chip_gen: v5e
topology: v5e:2x2
jax: 0.10.0
libtpu: 0.0.40
codegen_flags: <defaults>
</compile_context>

<pallas_src>
import jax
import jax.numpy as jnp
from jax import lax
from jax.experimental import pallas as pl
from jax.experimental.pallas import tpu as pltpu


def _round_up(x, m):
    return (x + m - 1) // m * m


def _vmem_limit_bytes():
    # ~75% of physical VMEM: ~96 MiB on v5e/v6e (128 MiB phys), ~48 MiB on v7x (64 MiB).
    try:
        cap = getattr(pltpu.get_tpu_info(), "vmem_capacity_bytes", None)
        if cap:
            return min(int(cap) * 3 // 4, 100 * 1024 * 1024)
    except Exception:
        pass
    return 48 * 1024 * 1024


def _choose_sp_tile(Sp, K, Cin_p, Cout, vmem_limit):
    # Bytes of kernel-1 VMEM that scale per lane of the spatial tile:
    #   (K, tile) bf16 patch scratch + (Cin_p, tile+2R) bf16 window
    #   + double-buffered bf16 yp output block + double-buffered f32 mask block.
    per_lane = 2 * K + 2 * Cin_p + 2 * 2 * Cout + 2 * 4
    budget = max(vmem_limit // 2, 1 << 20)   # leave room for the resident input slab
    tile = (budget // per_lane) // 128 * 128
    tile = max(128, min(tile, 8192))
    return min(tile, _round_up(Sp, 128))


def conv_block_forward(x, weight, bias, gamma, beta, *, eps=1e-5, sp_tile=None):
    """x: (N, Cin, D, H, W); weight: (Cout, Cin, 3, 3, 3); bias/gamma/beta: (Cout,)."""
    # A conv bias feeding training-mode BatchNorm cancels exactly: with y' = y - b,
    # mean' = mean - b, so (y - mean) == (y' - mean'). Fold it out entirely.
    del bias
    N, Cin, D, H, W = x.shape
    Cout = weight.shape[0]
    assert weight.shape == (Cout, Cin, 3, 3, 3)
    f32, bf16 = jnp.float32, jnp.bfloat16

    Dp, Hp, Wp = D + 2, H + 2, W + 2
    Sp = Dp * Hp * Wp                     # padded-grid positions (conv computed at all of them)
    R = Hp * Wp + Wp + 1                  # max |flat shift| of any 3x3x3 tap
    Cin_p = _round_up(Cin, 16)            # bf16 sublane packing
    K = 27 * Cin_p                        # contraction depth (no 128 padding)
    n_valid = N * D * H * W               # BN reduces over valid (non-border) positions only

    vmem_limit = _vmem_limit_bytes()
    if sp_tile is None:
        sp_tile = _choose_sp_tile(Sp, K, Cin_p, Cout, vmem_limit)
    assert sp_tile >= 128 and sp_tile % 128 == 0
    Sp_pad = _round_up(Sp, sp_tile)
    n_tiles = Sp_pad // sp_tile
    win_w = sp_tile + 2 * R

    # ---- input prep (cheap XLA glue; ~1x input size, bf16, no 27x blow-up) ----
    xp = jnp.pad(x.astype(bf16), ((0, 0), (0, 0), (1, 1), (1, 1), (1, 1)))
    xf = xp.reshape(N, Cin, Sp)
    # channel pad to Cin_p; flat halo: R zeros left, (Sp_pad - Sp) + R zeros right,
    # so every tap of every spatial tile is an in-bounds lane shift.
    xh = jnp.pad(xf, ((0, 0), (0, Cin_p - Cin), (R, Sp_pad - Sp + R)))   # (N, Cin_p, Sp_pad + 2R)

    # weights: tap-major / channel-minor rows matching the in-kernel patch layout (bf16)
    wt = weight.astype(bf16).transpose(2, 3, 4, 1, 0)                    # (3,3,3,Cin,Cout)
    wt = jnp.pad(wt, ((0, 0),) * 3 + ((0, Cin_p - Cin), (0, 0)))
    wT = wt.reshape(K, Cout).T                                           # (Cout, K)

    # 1.0 at valid (interior) padded-grid positions, 0.0 on border / spatial pad (for BN stats)
    vmask = jnp.zeros((Dp, Hp, Wp), f32).at[1:-1, 1:-1, 1:-1].set(1.0).reshape(1, Sp)
    vmask = jnp.pad(vmask, ((0, 0), (0, Sp_pad - Sp)))                   # (1, Sp_pad)

    # per-tap lane offsets inside a tile's halo window
    offsets = [
        R + (kd - 1) * Hp * Wp + (kh - 1) * Wp + (kw - 1)
        for kd in range(3) for kh in range(3) for kw in range(3)
    ]

    # ---- kernel 1: conv (in-VMEM bf16 im2col + one MXU matmul per tile) fused with BN stats ----
    def conv_stats_kernel(xh_ref, w_ref, m_ref, yp_ref, st_ref, win_ref, p_ref):
        j = pl.program_id(1)
        base = pl.multiple_of(j * sp_tile, 128)
        # stage this tile's halo window once (aligned dynamic lane slice of the
        # per-batch slab, which stays VMEM-resident across the spatial-tile axis)
        win_ref[...] = xh_ref[0, :, pl.ds(base, win_w)]
        # in-VMEM "im2col": 27 static lane-shifted bf16 copies
        for t, off in enumerate(offsets):
            p_ref[t * Cin_p:(t + 1) * Cin_p, :] = win_ref[:, off:off + sp_tile]
        # (Cout, K) @ (K, sp_tile): bf16 operands, f32 accumulation; lane axis = spatial
        y = jnp.dot(w_ref[...], p_ref[...], preferred_element_type=f32)
        yp_ref[0] = y.astype(bf16)
        # fused BN batch-stats epilogue over valid positions; re-read the freshly
        # written bf16 tile to keep vreg live ranges short (and to make the stats
        # self-consistent with the values kernel 2 will read).
        ym = yp_ref[0].astype(f32) * m_ref[...]
        st_ref[0, 0, :, 0:1] = jnp.sum(ym, axis=1, keepdims=True)
        st_ref[0, 0, :, 1:2] = jnp.sum(ym * ym, axis=1, keepdims=True)

    yp, stats = pl.pallas_call(
        conv_stats_kernel,
        out_shape=(jax.ShapeDtypeStruct((N, Cout, Sp_pad), bf16),
                   jax.ShapeDtypeStruct((N, n_tiles, Cout, 2), f32)),
        grid_spec=pltpu.PrefetchScalarGridSpec(
            num_scalar_prefetch=0,
            grid=(N, n_tiles),
            in_specs=[
                pl.BlockSpec((1, Cin_p, Sp_pad + 2 * R), lambda n, j: (n, 0, 0)),
                pl.BlockSpec((Cout, K), lambda n, j: (0, 0)),
                pl.BlockSpec((1, sp_tile), lambda n, j: (0, j)),
            ],
            out_specs=[
                pl.BlockSpec((1, Cout, sp_tile), lambda n, j: (n, 0, j)),
                pl.BlockSpec((1, 1, Cout, 2), lambda n, j: (n, j, 0, 0)),
            ],
            scratch_shapes=[pltpu.VMEM((Cin_p, win_w), bf16),
                            pltpu.VMEM((K, sp_tile), bf16)],
        ),
        compiler_params=pltpu.CompilerParams(
            dimension_semantics=("parallel", "parallel"),
            vmem_limit_bytes=vmem_limit,
        ),
    )(xh, wT, vmask)

    # ---- tiny per-channel scalar math (glue; 2*Cout values) ----
    s = jnp.sum(stats, axis=(0, 1))                       # (Cout, 2)
    mean = s[:, 0] / n_valid
    var = s[:, 1] / n_valid - mean * mean                 # biased var (PyTorch training BN)
    # NOTE: E[y^2]-E[y]^2 in f32 is fine at these sizes; use a compensated/two-pass
    # scheme if this is scaled to very large voxel counts.
    inv = lax.rsqrt(var + eps)
    g = gamma.astype(f32)
    scale = (g * inv).reshape(Cout, 1)
    shift = (beta.astype(f32) - mean * g * inv).reshape(Cout, 1)

    # ---- kernel 2: BN apply + LeakyReLU(0.01), lane-dense, spatially tiled ----
    def bn_lrelu_kernel(y_ref, sc_ref, sh_ref, o_ref):
        y = y_ref[0].astype(f32) * sc_ref[...] + sh_ref[...]
        o_ref[0] = jnp.maximum(y, 0.01 * y)

    out_p = pl.pallas_call(
        bn_lrelu_kernel,
        out_shape=jax.ShapeDtypeStruct((N, Cout, Sp_pad), f32),
        grid_spec=pltpu.PrefetchScalarGridSpec(
            num_scalar_prefetch=0,
            grid=(N, n_tiles),
            in_specs=[
                pl.BlockSpec((1, Cout, sp_tile), lambda n, j: (n, 0, j)),
                pl.BlockSpec((Cout, 1), lambda n, j: (0, 0)),
                pl.BlockSpec((Cout, 1), lambda n, j: (0, 0)),
            ],
            out_specs=pl.BlockSpec((1, Cout, sp_tile), lambda n, j: (n, 0, j)),
        ),
        compiler_params=pltpu.CompilerParams(
            dimension_semantics=("parallel", "parallel"),
            vmem_limit_bytes=vmem_limit,
        ),
    )(yp, scale, shift)

    # drop the spatial pad and the padded-grid border; layout is already NCDHW
    out = out_p[:, :, :Sp].reshape(N, Cout, Dp, Hp, Wp)[:, :, 1:-1, 1:-1, 1:-1]
    return out


def _reference(x, weight, bias, gamma, beta, eps=1e-5):
    """Pure-JAX f32 reference of the same forward pass (including the conv bias)."""
    y = lax.conv_general_dilated(
        x, weight, window_strides=(1, 1, 1), padding=((1, 1), (1, 1), (1, 1)),
        dimension_numbers=("NCDHW", "OIDHW", "NCDHW"))
    y = y + bias.reshape(1, -1, 1, 1, 1)
    mean = jnp.mean(y, axis=(0, 2, 3, 4), keepdims=True)
    var = jnp.mean((y - mean) ** 2, axis=(0, 2, 3, 4), keepdims=True)
    yhat = (y - mean) * lax.rsqrt(var + eps)
    yhat = yhat * gamma.reshape(1, -1, 1, 1, 1) + beta.reshape(1, -1, 1, 1, 1)
    return jnp.where(yhat > 0, yhat, 0.01 * yhat)


if __name__ == "__main__":
    N, Cin, Cout, D, H, W = 2, 4, 8, 8, 8, 8
    key = jax.random.PRNGKey(0)
    kx, kw, kb, kg, kbt = jax.random.split(key, 5)

    x = jax.random.normal(kx, (N, Cin, D, H, W), dtype=jnp.float32)
    weight = 0.1 * jax.random.normal(kw, (Cout, Cin, 3, 3, 3), dtype=jnp.float32)
    bias = 0.1 * jax.random.normal(kb, (Cout,), dtype=jnp.float32)
    gamma = 1.0 + 0.1 * jax.random.normal(kg, (Cout,), dtype=jnp.float32)
    beta = 0.1 * jax.random.normal(kbt, (Cout,), dtype=jnp.float32)

    # sp_tile=512 forces 2 spatial tiles at this toy size so the (N, n_tiles)
    # grid / halo-window path is exercised; default heuristic picks larger tiles.
    out = conv_block_forward(x, weight, bias, gamma, beta, sp_tile=512)
    out = jax.block_until_ready(out)

    ref = _reference(x, weight, bias, gamma, beta)
    assert out.shape == (N, Cout, D, H, W)
    # bf16 conv path + bf16 intermediate -> relaxed (but still tight) tolerance
    assert jnp.allclose(out, ref, atol=3e-2, rtol=3e-2), "mismatch vs reference"

    print("KERNEL_OK")
</pallas_src>

<mosaic_0001>
module attributes {stable_mosaic.version = 11 : i64} {
  func.func @conv_stats_kernel(%arg0: i32, %arg1: i32, %arg2: memref<1x16x1246xbf16, #tpu.memory_space<vmem>>, %arg3: memref<8x432xbf16, #tpu.memory_space<vmem>>, %arg4: memref<1x512xf32, #tpu.memory_space<vmem>>, %arg5: memref<1x8x512xbf16, #tpu.memory_space<vmem>>, %arg6: memref<1x1x8x2xf32, #tpu.memory_space<vmem>>, %arg7: memref<16x734xbf16, #tpu.memory_space<vmem>>, %arg8: memref<432x512xbf16, #tpu.memory_space<vmem>>) attributes {dimension_semantics = [#tpu.dimension_semantics<parallel>, #tpu.dimension_semantics<parallel>], iteration_bounds = array<i64: 2, 2>, scalar_prefetch = 0 : i64, scratch_operands = 2 : i64, tpu.core_type = #tpu.core_type<tc>, window_params = [{transform_indices = @transform_0, window_bounds = array<i64: 1, 16, 1246>}, {pipeline_mode = #tpu.pipeline_mode<synchronous>, transform_indices = @transform_1, window_bounds = array<i64: 8, 432>}, {transform_indices = @transform_2, window_bounds = array<i64: 1, 512>}, {transform_indices = @transform_3, window_bounds = array<i64: 1, 8, 512>}, {transform_indices = @transform_4, window_bounds = array<i64: 1, 1, 8, 2>}]} {
    %c512_i32 = arith.constant 512 : i32
    %0 = arith.muli %arg1, %c512_i32 : i32
    %1 = tpu.assume_multiple %0, 128 : i32
    %c0 = arith.constant 0 : index
    %c0_0 = arith.constant 0 : index
    %2 = arith.index_cast %1 : i32 to index
    %3 = vector.load %arg2[%c0, %c0_0, %2] : memref<1x16x1246xbf16, #tpu.memory_space<vmem>>, vector<1x16x734xbf16>
    %4 = vector.shape_cast %3 : vector<1x16x734xbf16> to vector<16x734xbf16>
    %c0_1 = arith.constant 0 : index
    %c0_2 = arith.constant 0 : index
    %5 = vector.load %arg7[%c0_1, %c0_2] : memref<16x734xbf16, #tpu.memory_space<vmem>>, vector<16x734xbf16>
    tpu.vector_store %arg7[%c0_1, %c0_2], %4 {strides = array<i32>} : memref<16x734xbf16, #tpu.memory_space<vmem>>, vector<16x734xbf16>,
    %c0_3 = arith.constant 0 : index
    %c0_4 = arith.constant 0 : index
    %6 = vector.load %arg7[%c0_3, %c0_4] : memref<16x734xbf16, #tpu.memory_space<vmem>>, vector<16x512xbf16>
    %c0_5 = arith.constant 0 : index
    %c0_6 = arith.constant 0 : index
    %7 = vector.load %arg8[%c0_5, %c0_6] : memref<432x512xbf16, #tpu.memory_space<vmem>>, vector<16x512xbf16>
    tpu.vector_store %arg8[%c0_5, %c0_6], %6 {strides = array<i32>} : memref<432x512xbf16, #tpu.memory_space<vmem>>, vector<16x512xbf16>,
    %c0_7 = arith.constant 0 : index
    %c1 = arith.constant 1 : index
    %8 = vector.load %arg7[%c0_7, %c1] : memref<16x734xbf16, #tpu.memory_space<vmem>>, vector<16x512xbf16>
    %c16 = arith.constant 16 : index
    %c0_8 = arith.constant 0 : index
    %9 = vector.load %arg8[%c16, %c0_8] : memref<432x512xbf16, #tpu.memory_space<vmem>>, vector<16x512xbf16>
    tpu.vector_store %arg8[%c16, %c0_8], %8 {strides = array<i32>} : memref<432x512xbf16, #tpu.memory_space<vmem>>, vector<16x512xbf16>,
    %c0_9 = arith.constant 0 : index
    %c2 = arith.constant 2 : index
    %10 = vector.load %arg7[%c0_9, %c2] : memref<16x734xbf16, #tpu.memory_space<vmem>>, vector<16x512xbf16>
    %c32 = arith.constant 32 : index
    %c0_10 = arith.constant 0 : index
    %11 = vector.load %arg8[%c32, %c0_10] : memref<432x512xbf16, #tpu.memory_space<vmem>>, vector<16x512xbf16>
    tpu.vector_store %arg8[%c32, %c0_10], %10 {strides = array<i32>} : memref<432x512xbf16, #tpu.memory_space<vmem>>, vector<16x512xbf16>,
    %c0_11 = arith.constant 0 : index
    %c10 = arith.constant 10 : index
    %12 = vector.load %arg7[%c0_11, %c10] : memref<16x734xbf16, #tpu.memory_space<vmem>>, vector<16x512xbf16>
    %c48 = arith.constant 48 : index
    %c0_12 = arith.constant 0 : index
    %13 = vector.load %arg8[%c48, %c0_12] : memref<432x512xbf16, #tpu.memory_space<vmem>>, vector<16x512xbf16>
    tpu.vector_store %arg8[%c48, %c0_12], %12 {strides = array<i32>} : memref<432x512xbf16, #tpu.memory_space<vmem>>, vector<16x512xbf16>,
    %c0_13 = arith.constant 0 : index
    %c11 = arith.constant 11 : index
    %14 = vector.load %arg7[%c0_13, %c11] : memref<16x734xbf16, #tpu.memory_space<vmem>>, vector<16x512xbf16>
    %c64 = arith.constant 64 : index
    %c0_14 = arith.constant 0 : index
    %15 = vector.load %arg8[%c64, %c0_14] : memref<432x512xbf16, #tpu.memory_space<vmem>>, vector<16x512xbf16>
    tpu.vector_store %arg8[%c64, %c0_14], %14 {strides = array<i32>} : memref<432x512xbf16, #tpu.memory_space<vmem>>, vector<16x512xbf16>,
    %c0_15 = arith.constant 0 : index
    %c12 = arith.constant 12 : index
    %16 = vector.load %arg7[%c0_15, %c12] : memref<16x734xbf16, #tpu.memory_space<vmem>>, vector<16x512xbf16>
    %c80 = arith.constant 80 : index
    %c0_16 = arith.constant 0 : index
    %17 = vector.load %arg8[%c80, %c0_16] : memref<432x512xbf16, #tpu.memory_space<vmem>>, vector<16x512xbf16>
    tpu.vector_store %arg8[%c80, %c0_16], %16 {strides = array<i32>} : memref<432x512xbf16, #tpu.memory_space<vmem>>, vector<16x512xbf16>,
    %c0_17 = arith.constant 0 : index
    %c20 = arith.constant 20 : index
    %18 = vector.load %arg7[%c0_17, %c20] : memref<16x734xbf16, #tpu.memory_space<vmem>>, vector<16x512xbf16>
    %c96 = arith.constant 96 : index
    %c0_18 = arith.constant 0 : index
    %19 = vector.load %arg8[%c96, %c0_18] : memref<432x512xbf16, #tpu.memory_space<vmem>>, vector<16x512xbf16>
    tpu.vector_store %arg8[%c96, %c0_18], %18 {strides = array<i32>} : memref<432x512xbf16, #tpu.memory_space<vmem>>, vector<16x512xbf16>,
    %c0_19 = arith.constant 0 : index
    %c21 = arith.constant 21 : index
    %20 = vector.load %arg7[%c0_19, %c21] : memref<16x734xbf16, #tpu.memory_space<vmem>>, vector<16x512xbf16>
    %c112 = arith.constant 112 : index
    %c0_20 = arith.constant 0 : index
    %21 = vector.load %arg8[%c112, %c0_20] : memref<432x512xbf16, #tpu.memory_space<vmem>>, vector<16x512xbf16>
    tpu.vector_store %arg8[%c112, %c0_20], %20 {strides = array<i32>} : memref<432x512xbf16, #tpu.memory_space<vmem>>, vector<16x512xbf16>,
    %c0_21 = arith.constant 0 : index
    %c22 = arith.constant 22 : index
    %22 = vector.load %arg7[%c0_21, %c22] : memref<16x734xbf16, #tpu.memory_space<vmem>>, vector<16x512xbf16>
    %c128 = arith.constant 128 : index
    %c0_22 = arith.constant 0 : index
    %23 = vector.load %arg8[%c128, %c0_22] : memref<432x512xbf16, #tpu.memory_space<vmem>>, vector<16x512xbf16>
    tpu.vector_store %arg8[%c128, %c0_22], %22 {strides = array<i32>} : memref<432x512xbf16, #tpu.memory_space<vmem>>, vector<16x512xbf16>,
    %c0_23 = arith.constant 0 : index
    %c100 = arith.constant 100 : index
    %24 = vector.load %arg7[%c0_23, %c100] : memref<16x734xbf16, #tpu.memory_space<vmem>>, vector<16x512xbf16>
    %c144 = arith.constant 144 : index
    %c0_24 = arith.constant 0 : index
    %25 = vector.load %arg8[%c144, %c0_24] : memref<432x512xbf16, #tpu.memory_space<vmem>>, vector<16x512xbf16>
    tpu.vector_store %arg8[%c144, %c0_24], %24 {strides = array<i32>} : memref<432x512xbf16, #tpu.memory_space<vmem>>, vector<16x512xbf16>,
    %c0_25 = arith.constant 0 : index
    %c101 = arith.constant 101 : index
    %26 = vector.load %arg7[%c0_25, %c101] : memref<16x734xbf16, #tpu.memory_space<vmem>>, vector<16x512xbf16>
    %c160 = arith.constant 160 : index
    %c0_26 = arith.constant 0 : index
    %27 = vector.load %arg8[%c160, %c0_26] : memref<432x512xbf16, #tpu.memory_space<vmem>>, vector<16x512xbf16>
    tpu.vector_store %arg8[%c160, %c0_26], %26 {strides = array<i32>} : memref<432x512xbf16, #tpu.memory_space<vmem>>, vector<16x512xbf16>,
    %c0_27 = arith.constant 0 : index
    %c102 = arith.constant 102 : index
    %28 = vector.load %arg7[%c0_27, %c102] : memref<16x734xbf16, #tpu.memory_space<vmem>>, vector<16x512xbf16>
    %c176 = arith.constant 176 : index
    %c0_28 = arith.constant 0 : index
    %29 = vector.load %arg8[%c176, %c0_28] : memref<432x512xbf16, #tpu.memory_space<vmem>>, vector<16x512xbf16>
    tpu.vector_store %arg8[%c176, %c0_28], %28 {strides = array<i32>} : memref<432x512xbf16, #tpu.memory_space<vmem>>, vector<16x512xbf16>,
    %c0_29 = arith.constant 0 : index
    %c110 = arith.constant 110 : index
    %30 = vector.load %arg7[%c0_29, %c110] : memref<16x734xbf16, #tpu.memory_space<vmem>>, vector<16x512xbf16>
    %c192 = arith.constant 192 : index
    %c0_30 = arith.constant 0 : index
    %31 = vector.load %arg8[%c192, %c0_30] : memref<432x512xbf16, #tpu.memory_space<vmem>>, vector<16x512xbf16>
    tpu.vector_store %arg8[%c192, %c0_30], %30 {strides = array<i32>} : memref<432x512xbf16, #tpu.memory_space<vmem>>, vector<16x512xbf16>,
    %c0_31 = arith.constant 0 : index
    %c111 = arith.constant 111 : index
    %32 = vector.load %arg7[%c0_31, %c111] : memref<16x734xbf16, #tpu.memory_space<vmem>>, vector<16x512xbf16>
    %c208 = arith.constant 208 : index
    %c0_32 = arith.constant 0 : index
    %33 = vector.load %arg8[%c208, %c0_32] : memref<432x512xbf16, #tpu.memory_space<vmem>>, vector<16x512xbf16>
    tpu.vector_store %arg8[%c208, %c0_32], %32 {strides = array<i32>} : memref<432x512xbf16, #tpu.memory_space<vmem>>, vector<16x512xbf16>,
    %c0_33 = arith.constant 0 : index
    %c112_34 = arith.constant 112 : index
    %34 = vector.load %arg7[%c0_33, %c112_34] : memref<16x734xbf16, #tpu.memory_space<vmem>>, vector<16x512xbf16>
    %c224 = arith.constant 224 : index
    %c0_35 = arith.constant 0 : index
    %35 = vector.load %arg8[%c224, %c0_35] : memref<432x512xbf16, #tpu.memory_space<vmem>>, vector<16x512xbf16>
    tpu.vector_store %arg8[%c224, %c0_35], %34 {strides = array<i32>} : memref<432x512xbf16, #tpu.memory_space<vmem>>, vector<16x512xbf16>,
    %c0_36 = arith.constant 0 : index
    %c120 = arith.constant 120 : index
    %36 = vector.load %arg7[%c0_36, %c120] : memref<16x734xbf16, #tpu.memory_space<vmem>>, vector<16x512xbf16>
    %c240 = arith.constant 240 : index
    %c0_37 = arith.constant 0 : index
    %37 = vector.load %arg8[%c240, %c0_37] : memref<432x512xbf16, #tpu.memory_space<vmem>>, vector<16x512xbf16>
    tpu.vector_store %arg8[%c240, %c0_37], %36 {strides = array<i32>} : memref<432x512xbf16, #tpu.memory_space<vmem>>, vector<16x512xbf16>,
    %c0_38 = arith.constant 0 : index
    %c121 = arith.constant 121 : index
    %38 = vector.load %arg7[%c0_38, %c121] : memref<16x734xbf16, #tpu.memory_space<vmem>>, vector<16x512xbf16>
    %c256 = arith.constant 256 : index
    %c0_39 = arith.constant 0 : index
    %39 = vector.load %arg8[%c256, %c0_39] : memref<432x512xbf16, #tpu.memory_space<vmem>>, vector<16x512xbf16>
    tpu.vector_store %arg8[%c256, %c0_39], %38 {strides = array<i32>} : memref<432x512xbf16, #tpu.memory_space<vmem>>, vector<16x512xbf16>,
    %c0_40 = arith.constant 0 : index
    %c122 = arith.constant 122 : index
    %40 = vector.load %arg7[%c0_40, %c122] : memref<16x734xbf16, #tpu.memory_space<vmem>>, vector<16x512xbf16>
    %c272 = arith.constant 272 : index
    %c0_41 = arith.constant 0 : index
    %41 = vector.load %arg8[%c272, %c0_41] : memref<432x512xbf16, #tpu.memory_space<vmem>>, vector<16x512xbf16>
    tpu.vector_store %arg8[%c272, %c0_41], %40 {strides = array<i32>} : memref<432x512xbf16, #tpu.memory_space<vmem>>, vector<16x512xbf16>,
    %c0_42 = arith.constant 0 : index
    %c200 = arith.constant 200 : index
    %42 = vector.load %arg7[%c0_42, %c200] : memref<16x734xbf16, #tpu.memory_space<vmem>>, vector<16x512xbf16>
    %c288 = arith.constant 288 : index
    %c0_43 = arith.constant 0 : index
    %43 = vector.load %arg8[%c288, %c0_43] : memref<432x512xbf16, #tpu.memory_space<vmem>>, vector<16x512xbf16>
    tpu.vector_store %arg8[%c288, %c0_43], %42 {strides = array<i32>} : memref<432x512xbf16, #tpu.memory_space<vmem>>, vector<16x512xbf16>,
    %c0_44 = arith.constant 0 : index
    %c201 = arith.constant 201 : index
    %44 = vector.load %arg7[%c0_44, %c201] : memref<16x734xbf16, #tpu.memory_space<vmem>>, vector<16x512xbf16>
    %c304 = arith.constant 304 : index
    %c0_45 = arith.constant 0 : index
    %45 = vector.load %arg8[%c304, %c0_45] : memref<432x512xbf16, #tpu.memory_space<vmem>>, vector<16x512xbf16>
    tpu.vector_store %arg8[%c304, %c0_45], %44 {strides = array<i32>} : memref<432x512xbf16, #tpu.memory_space<vmem>>, vector<16x512xbf16>,
    %c0_46 = arith.constant 0 : index
    %c202 = arith.constant 202 : index
    %46 = vector.load %arg7[%c0_46, %c202] : memref<16x734xbf16, #tpu.memory_space<vmem>>, vector<16x512xbf16>
    %c320 = arith.constant 320 : index
    %c0_47 = arith.constant 0 : index
    %47 = vector.load %arg8[%c320, %c0_47] : memref<432x512xbf16, #tpu.memory_space<vmem>>, vector<16x512xbf16>
    tpu.vector_store %arg8[%c320, %c0_47], %46 {strides = array<i32>} : memref<432x512xbf16, #tpu.memory_space<vmem>>, vector<16x512xbf16>,
    %c0_48 = arith.constant 0 : index
    %c210 = arith.constant 210 : index
    %48 = vector.load %arg7[%c0_48, %c210] : memref<16x734xbf16, #tpu.memory_space<vmem>>, vector<16x512xbf16>
    %c336 = arith.constant 336 : index
    %c0_49 = arith.constant 0 : index
    %49 = vector.load %arg8[%c336, %c0_49] : memref<432x512xbf16, #tpu.memory_space<vmem>>, vector<16x512xbf16>
    tpu.vector_store %arg8[%c336, %c0_49], %48 {strides = array<i32>} : memref<432x512xbf16, #tpu.memory_space<vmem>>, vector<16x512xbf16>,
    %c0_50 = arith.constant 0 : index
    %c211 = arith.constant 211 : index
    %50 = vector.load %arg7[%c0_50, %c211] : memref<16x734xbf16, #tpu.memory_space<vmem>>, vector<16x512xbf16>
    %c352 = arith.constant 352 : index
    %c0_51 = arith.constant 0 : index
    %51 = vector.load %arg8[%c352, %c0_51] : memref<432x512xbf16, #tpu.memory_space<vmem>>, vector<16x512xbf16>
    tpu.vector_store %arg8[%c352, %c0_51], %50 {strides = array<i32>} : memref<432x512xbf16, #tpu.memory_space<vmem>>, vector<16x512xbf16>,
    %c0_52 = arith.constant 0 : index
    %c212 = arith.constant 212 : index
    %52 = vector.load %arg7[%c0_52, %c212] : memref<16x734xbf16, #tpu.memory_space<vmem>>, vector<16x512xbf16>
    %c368 = arith.constant 368 : index
    %c0_53 = arith.constant 0 : index
    %53 = vector.load %arg8[%c368, %c0_53] : memref<432x512xbf16, #tpu.memory_space<vmem>>, vector<16x512xbf16>
    tpu.vector_store %arg8[%c368, %c0_53], %52 {strides = array<i32>} : memref<432x512xbf16, #tpu.memory_space<vmem>>, vector<16x512xbf16>,
    %c0_54 = arith.constant 0 : index
    %c220 = arith.constant 220 : index
    %54 = vector.load %arg7[%c0_54, %c220] : memref<16x734xbf16, #tpu.memory_space<vmem>>, vector<16x512xbf16>
    %c384 = arith.constant 384 : index
    %c0_55 = arith.constant 0 : index
    %55 = vector.load %arg8[%c384, %c0_55] : memref<432x512xbf16, #tpu.memory_space<vmem>>, vector<16x512xbf16>
    tpu.vector_store %arg8[%c384, %c0_55], %54 {strides = array<i32>} : memref<432x512xbf16, #tpu.memory_space<vmem>>, vector<16x512xbf16>,
    %c0_56 = arith.constant 0 : index
    %c221 = arith.constant 221 : index
    %56 = vector.load %arg7[%c0_56, %c221] : memref<16x734xbf16, #tpu.memory_space<vmem>>, vector<16x512xbf16>
    %c400 = arith.constant 400 : index
    %c0_57 = arith.constant 0 : index
    %57 = vector.load %arg8[%c400, %c0_57] : memref<432x512xbf16, #tpu.memory_space<vmem>>, vector<16x512xbf16>
    tpu.vector_store %arg8[%c400, %c0_57], %56 {strides = array<i32>} : memref<432x512xbf16, #tpu.memory_space<vmem>>, vector<16x512xbf16>,
    %c0_58 = arith.constant 0 : index
    %c222 = arith.constant 222 : index
    %58 = vector.load %arg7[%c0_58, %c222] : memref<16x734xbf16, #tpu.memory_space<vmem>>, vector<16x512xbf16>
    %c416 = arith.constant 416 : index
    %c0_59 = arith.constant 0 : index
    %59 = vector.load %arg8[%c416, %c0_59] : memref<432x512xbf16, #tpu.memory_space<vmem>>, vector<16x512xbf16>
    tpu.vector_store %arg8[%c416, %c0_59], %58 {strides = array<i32>} : memref<432x512xbf16, #tpu.memory_space<vmem>>, vector<16x512xbf16>,
    %c0_60 = arith.constant 0 : index
    %c0_61 = arith.constant 0 : index
    %60 = vector.load %arg3[%c0_60, %c0_61] : memref<8x432xbf16, #tpu.memory_space<vmem>>, vector<8x432xbf16>
    %c0_62 = arith.constant 0 : index
    %c0_63 = arith.constant 0 : index
    %61 = vector.load %arg8[%c0_62, %c0_63] : memref<432x512xbf16, #tpu.memory_space<vmem>>, vector<432x512xbf16>
    %cst = arith.constant dense<0.000000e+00> : vector<8x512xf32>
    %62 = tpu.matmul %60, %61, %cst {dimension_numbers = #tpu.dot_dimension_numbers<[1], [0], [0], [1], [0, 0, 1, 1], [], []>} : vector<8x432xbf16>, vector<432x512xbf16>, vector<8x512xf32> -> vector<8x512xf32>
    %63 = arith.truncf %62 : vector<8x512xf32> to vector<8x512xbf16>
    %c0_64 = arith.constant 0 : index
    %c0_65 = arith.constant 0 : index
    %c0_66 = arith.constant 0 : index
    %64 = vector.load %arg5[%c0_64, %c0_65, %c0_66] : memref<1x8x512xbf16, #tpu.memory_space<vmem>>, vector<1x8x512xbf16>
    %65 = vector.shape_cast %64 : vector<1x8x512xbf16> to vector<8x512xbf16>
    %66 = vector.shape_cast %63 : vector<8x512xbf16> to vector<1x8x512xbf16>
    tpu.vector_store %arg5[%c0_64, %c0_65, %c0_66], %66 {strides = array<i32>} : memref<1x8x512xbf16, #tpu.memory_space<vmem>>, vector<1x8x512xbf16>,
    %c0_67 = arith.constant 0 : index
    %c0_68 = arith.constant 0 : index
    %c0_69 = arith.constant 0 : index
    %67 = vector.load %arg5[%c0_67, %c0_68, %c0_69] : memref<1x8x512xbf16, #tpu.memory_space<vmem>>, vector<1x8x512xbf16>
    %68 = vector.shape_cast %67 : vector<1x8x512xbf16> to vector<8x512xbf16>
    %69 = arith.extf %68 : vector<8x512xbf16> to vector<8x512xf32>
    %c0_70 = arith.constant 0 : index
    %c0_71 = arith.constant 0 : index
    %70 = vector.load %arg4[%c0_70, %c0_71] : memref<1x512xf32, #tpu.memory_space<vmem>>, vector<1x512xf32>
    %71 = vector.broadcast %70 : vector<1x512xf32> to vector<8x512xf32>
    %72 = arith.mulf %69, %71 : vector<8x512xf32>
    %cst_72 = arith.constant dense<0.000000e+00> : vector<8xf32>
    %73 = vector.multi_reduction <add>, %72, %cst_72 [1] : vector<8x512xf32> to vector<8xf32>
    %74 = vector.shape_cast %73 : vector<8xf32> to vector<8x1xf32>
    %c0_73 = arith.constant 0 : index
    %c0_74 = arith.constant 0 : index
    %c0_75 = arith.constant 0 : index
    %c0_76 = arith.constant 0 : index
    %75 = vector.load %arg6[%c0_73, %c0_74, %c0_75, %c0_76] : memref<1x1x8x2xf32, #tpu.memory_space<vmem>>, vector<1x1x8x1xf32>
    %76 = vector.shape_cast %75 : vector<1x1x8x1xf32> to vector<8x1xf32>
    %77 = vector.shape_cast %74 : vector<8x1xf32> to vector<1x1x8x1xf32>
    tpu.vector_store %arg6[%c0_73, %c0_74, %c0_75, %c0_76], %77 {strides = array<i32>} : memref<1x1x8x2xf32, #tpu.memory_space<vmem>>, vector<1x1x8x1xf32>,
    %78 = arith.mulf %72, %72 : vector<8x512xf32>
    %cst_77 = arith.constant dense<0.000000e+00> : vector<8xf32>
    %79 = vector.multi_reduction <add>, %78, %cst_77 [1] : vector<8x512xf32> to vector<8xf32>
    %80 = vector.shape_cast %79 : vector<8xf32> to vector<8x1xf32>
    %c0_78 = arith.constant 0 : index
    %c0_79 = arith.constant 0 : index
    %c0_80 = arith.constant 0 : index
    %c1_81 = arith.constant 1 : index
    %81 = vector.load %arg6[%c0_78, %c0_79, %c0_80, %c1_81] : memref<1x1x8x2xf32, #tpu.memory_space<vmem>>, vector<1x1x8x1xf32>
    %82 = vector.shape_cast %81 : vector<1x1x8x1xf32> to vector<8x1xf32>
    %83 = vector.shape_cast %80 : vector<8x1xf32> to vector<1x1x8x1xf32>
    tpu.vector_store %arg6[%c0_78, %c0_79, %c0_80, %c1_81], %83 {strides = array<i32>} : memref<1x1x8x2xf32, #tpu.memory_space<vmem>>, vector<1x1x8x1xf32>,
    return
  }
  func.func @transform_0(%arg0: i32, %arg1: i32) -> (i32, i32, i32) {
    %c0_i32 = arith.constant 0 : i32
    %c0_i32_0 = arith.constant 0 : i32
    %c0_i32_1 = arith.constant 0 : i32
    return %arg0, %c0_i32, %c0_i32_0 : i32, i32, i32
  }
  func.func @transform_1(%arg0: i32, %arg1: i32) -> (i32, i32) {
    %c0_i32 = arith.constant 0 : i32
    %c0_i32_0 = arith.constant 0 : i32
    %c0_i32_1 = arith.constant 0 : i32
    return %c0_i32, %c0_i32_0 : i32, i32
  }
  func.func @transform_2(%arg0: i32, %arg1: i32) -> (i32, i32) {
    %c0_i32 = arith.constant 0 : i32
    %c0_i32_0 = arith.constant 0 : i32
    return %c0_i32, %arg1 : i32, i32
  }
  func.func @transform_3(%arg0: i32, %arg1: i32) -> (i32, i32, i32) {
    %c0_i32 = arith.constant 0 : i32
    %c0_i32_0 = arith.constant 0 : i32
    return %arg0, %c0_i32, %arg1 : i32, i32, i32
  }
  func.func @transform_4(%arg0: i32, %arg1: i32) -> (i32, i32, i32, i32) {
    %c0_i32 = arith.constant 0 : i32
    %c0_i32_0 = arith.constant 0 : i32
    %c0_i32_1 = arith.constant 0 : i32
    return %arg0, %arg1, %c0_i32, %c0_i32_0 : i32, i32, i32, i32
  }
}

</mosaic_0001>

<llo_original>
// kernel: tpu_custom_call.1
$region0: #{tpu_custom_call.1}
  #allocation0 [shape = 'u32[]', space=smem, size = 0x4, offset = 0x4, fixed_abs, tag = 'smem constant byte address 0x4 - core index']
  #allocation1 [shape = 'u32[72,128]{1,0:T(1,128)}', space=vmem, size = 0x9000, scoped, tag = 'internal scratch']
  #allocation2 [shape = 'bf16[16,734]{1,0:T(8,128)(2,1)}', space=vmem, size = 0x6000, scoped, tag = 'scratch operand']
  #allocation3 [shape = 'bf16[432,512]{1,0:T(8,128)(2,1)}', space=vmem, size = 0x6c000, scoped, tag = 'scratch operand']
  %s0 = inlined_call_operand.hbm [shape: bf16[2,16,1246], index: 0, kind: input, shape index: {}]
  %s1 = inlined_call_operand.hbm [shape: bf16[8,432], index: 1, kind: input, shape index: {}]
  %s2 = inlined_call_operand.hbm [shape: f32[1,1024], index: 2, kind: input, shape index: {}]
  %s3 = inlined_call_operand.hbm [shape: bf16[2,8,1024], index: 3, kind: output, shape index: {0}]
  %s4 = inlined_call_operand.vmem [shape: f32[2,2,8,2], index: 4, kind: output, shape index: {1}]
  %5 = xla_tuple %s3, %s4
  %s6 = sld [smem:[#allocation0]]
  $region65: #{tpu_custom_call.1} parent=0
    _
  %s8 = ssub.s32 1, %s6
  %s9 = scalar_select 0, %s8, %s6
  $region1: #{tpu_custom_call.1} parent=0
    #allocation4 [shape = 'u8[81920]{0}', space=vmem, size = 0x14000, scoped, tag = 'input window, operand 0']
    #allocation5 [shape = 's32[2]{0}', space=sflag, size = 0x8, scoped, tag = 'scoped memory for tpu_custom_call.1']
    #allocation6 [shape = 's32[2]{0}', space=sflag, size = 0x8, scoped, tag = 'scoped memory for tpu_custom_call.1']
    #allocation7 [shape = 'u8[8192]{0}', space=vmem, size = 0x2000, scoped, tag = 'input window, operand 1, single buffered']
    #allocation8 [shape = 's32[1]{0}', space=sflag, size = 0x4, scoped, tag = 'scoped memory for tpu_custom_call.1']
    #allocation9 [shape = 'u8[4096]{0}', space=vmem, size = 0x1000, scoped, tag = 'input window, operand 2']
    #allocation10 [shape = 'u8[16384]{0}', space=vmem, size = 0x4000, scoped, tag = 'output window, operand 0']
    %10 = vsyncpa [#allocation5], 0
    %s11 = scalar_lea.sflag [#allocation5], 1
    %12 = vsyncpa %s11, 0
    %13 = vsyncpa [#allocation8], 0
    %14 = vsyncpa [#allocation6], 0
    %s15 = scalar_lea.sflag [#allocation6], 1
    %16 = vsyncpa %s15, 0
    loop: start=0, step=1, limit=6
    $region2: #{tpu_custom_call.1} parent=1 // loop_pre_header
      _
    $region3: #{tpu_custom_call.1} parent=1 // loop_header
      %s18 = sphi 0, %s22
      %p19 = scmp.ge.s32.totalorder %s18, 6
      %s25 = sphi 0, %s37
      %s26 = sphi 0, %s33
      %s27 = sphi 0, %s25
      %s28 = sphi 0, %s26
      %s29 = sphi 0, %s27
      %s30 = sphi 0, %s28
      %s40 = sphi 0, %s42
      %s43 = sphi 0, %s40
      %s44 = sphi 0, %s43
      %s60 = sphi 0, %s44
      %s64 = sphi 0, %s64
      %s66 = sphi 0, %s64
      %s67 = sphi 0, %s66
      %s81 = sphi 0, %s67
      %s87 = sphi 0, %s89
      %s90 = sphi 0, %s87
      %s91 = sphi 0, %s90
      %s107 = sphi 0, %s91
      %s115 = sphi 0, %s117
      %s118 = sphi 0, %s115
      %s119 = sphi 0, %s118
      %s135 = sphi 0, %s119
      %s143 = sphi 0, %s145
      %s146 = sphi 0, %s143
      %s147 = sphi 0, %s146
      %s163 = sphi 0, %s147
    $region4: #{tpu_custom_call.1} parent=1 // loop_header_branch
      %21 = sbr.rel (%p19) target = $region8
    $region5: #{tpu_custom_call.1} parent=1 // loop_body
      %s23 = ssub.s32 %s18, 1
      %s24 = ssub.s32 %s18, 2
      %s31 = sadd.s32 1, %s26
      %p32 = scmp.ge.s32.totalorder %s31, 2
      %s33 = scalar_select %p32, 0, %s31
      %s34 = sadd.s32 1, %s25
      %s35 = scalar_select %p32, %s34, %s25
      %p36 = scmp.ge.s32.totalorder %s35, 2
      %s37 = scalar_select %p36, 0, %s35
      %s38 = ssub.s32 %s25, %s37
      %p39 = scmp.eq.s32.totalorder %s38, 0
      %s41 = sadd.s32 %s40, 1
      %s42 = scalar_select %p39, %s40, %s41
      %p45 = pneg %p39
      %p46 = scmp.eq.s32.totalorder %s18, 3
      %p47 = por %p45, %p46
      %p48 = scmp.ne.s32.totalorder %s40, %s43
      %p49 = scmp.eq.s32.totalorder %s18, 0
      %p50 = por %p48, %p49
      %p51 = scmp.ne.s32.totalorder %s40, %s43
      %p52 = scmp.eq.s32.totalorder %s23, 3
      %p53 = por %p51, %p52
      %p54 = scmp.ne.s32.totalorder %s43, %s44
      %p55 = scmp.eq.s32.totalorder %s23, 0
      %p56 = por %p54, %p55
      %p57 = scmp.ne.s32.totalorder %s43, %s44
      %p58 = scmp.eq.s32.totalorder %s24, 3
      %p59 = por %p57, %p58
      %p61 = scmp.ne.s32.totalorder %s44, %s60
      %p62 = scmp.eq.s32.totalorder %s24, 0
      %p63 = por %p61, %p62
      %s65 = sadd.s32 %s64, 1
      %p68 = scmp.eq.s32.totalorder %s18, 3
      %p69 = scmp.ne.s32.totalorder %s64, %s66
      %p70 = scmp.eq.s32.totalorder %s18, 0
      %p71 = por %p69, %p70
      %p72 = scmp.ne.s32.totalorder %s64, %s66
      %p73 = scmp.eq.s32.totalorder %s23, 3
      %p74 = por %p72, %p73
      %p75 = scmp.ne.s32.totalorder %s66, %s67
      %p76 = scmp.eq.s32.totalorder %s23, 0
      %p77 = por %p75, %p76
      %p78 = scmp.ne.s32.totalorder %s66, %s67
      %p79 = scmp.eq.s32.totalorder %s24, 3
      %p80 = por %p78, %p79
      %p82 = scmp.ne.s32.totalorder %s67, %s81
      %p83 = scmp.eq.s32.totalorder %s24, 0
      %p84 = por %p82, %p83
      %s85 = ssub.s32 %s26, %s33
      %p86 = scmp.eq.s32.totalorder %s85, 0
      %s88 = sadd.s32 %s87, 1
      %s89 = scalar_select %p86, %s87, %s88
      %p92 = pneg %p86
      %p93 = scmp.eq.s32.totalorder %s18, 3
      %p94 = por %p92, %p93
      %p95 = scmp.ne.s32.totalorder %s87, %s90
      %p96 = scmp.eq.s32.totalorder %s18, 0
      %p97 = por %p95, %p96
      %p98 = scmp.ne.s32.totalorder %s87, %s90
      %p99 = scmp.eq.s32.totalorder %s23, 3
      %p100 = por %p98, %p99
      %p101 = scmp.ne.s32.totalorder %s90, %s91
      %p102 = scmp.eq.s32.totalorder %s23, 0
      %p103 = por %p101, %p102
      %p104 = scmp.ne.s32.totalorder %s90, %s91
      %p105 = scmp.eq.s32.totalorder %s24, 3
      %p106 = por %p104, %p105
      %p108 = scmp.ne.s32.totalorder %s91, %s107
      %p109 = scmp.eq.s32.totalorder %s24, 0
      %p110 = por %p108, %p109
      %s111 = ssub.s32 %s25, %s37
      %s112 = ssub.s32 %s26, %s33
      %s113 = sor.u32 %s111, %s112
      %p114 = scmp.eq.s32.totalorder %s113, 0
      %s116 = sadd.s32 %s115, 1
      %s117 = scalar_select %p114, %s115, %s116
      %p120 = pneg %p114
      %p121 = scmp.eq.s32.totalorder %s18, 3
      %p122 = por %p120, %p121
      %p123 = scmp.ne.s32.totalorder %s115, %s118
      %p124 = scmp.eq.s32.totalorder %s18, 0
      %p125 = por %p123, %p124
      %p126 = scmp.ne.s32.totalorder %s115, %s118
      %p127 = scmp.eq.s32.totalorder %s23, 3
      %p128 = por %p126, %p127
      %p129 = scmp.ne.s32.totalorder %s118, %s119
      %p130 = scmp.eq.s32.totalorder %s23, 0
      %p131 = por %p129, %p130
      %p132 = scmp.ne.s32.totalorder %s118, %s119
      %p133 = scmp.eq.s32.totalorder %s24, 3
      %p134 = por %p132, %p133
      %p136 = scmp.ne.s32.totalorder %s119, %s135
      %p137 = scmp.eq.s32.totalorder %s24, 0
      %p138 = por %p136, %p137
      %s139 = ssub.s32 %s25, %s37
      %s140 = ssub.s32 %s26, %s33
      %s141 = sor.u32 %s139, %s140
      %p142 = scmp.eq.s32.totalorder %s141, 0
      %s144 = sadd.s32 %s143, 1
      %s145 = scalar_select %p142, %s143, %s144
      %p148 = pneg %p142
      %p149 = scmp.eq.s32.totalorder %s18, 3
      %p150 = por %p148, %p149
      %p151 = scmp.ne.s32.totalorder %s143, %s146
      %p152 = scmp.eq.s32.totalorder %s18, 0
      %p153 = por %p151, %p152
      %p154 = scmp.ne.s32.totalorder %s143, %s146
      %p155 = scmp.eq.s32.totalorder %s23, 3
      %p156 = por %p154, %p155
      %p157 = scmp.ne.s32.totalorder %s146, %s147
      %p158 = scmp.eq.s32.totalorder %s23, 0
      %p159 = por %p157, %p158
      %p160 = scmp.ne.s32.totalorder %s146, %s147
      %p161 = scmp.eq.s32.totalorder %s24, 3
      %p162 = por %p160, %p161
      %p164 = scmp.ne.s32.totalorder %s147, %s163
      %p165 = scmp.eq.s32.totalorder %s24, 0
      %p166 = por %p164, %p165
      %p167 = scmp.le.s32.totalorder 1, %s18
      %p168 = scmp.lt.s32.totalorder %s18, 5
      %p169 = pnand %p167, %p168
      %p170 = pneg %p169
      // Predicated region
      $region9: #{tpu_custom_call.1} parent=5 // pred_check
        _
      $region10: #{tpu_custom_call.1} parent=5 // pred_check_branch
        %172 = sbr.rel (%p169) target = $region12
      $region11: #{tpu_custom_call.1} parent=5 // pred_region
        %s173 = ssub.s32 %s18, 1
        // Predicated region
        $region13: #{tpu_custom_call.1} parent=11 // pred_check
          %p174 = pneg %p77
        $region14: #{tpu_custom_call.1} parent=11 // pred_check_branch
          %176 = sbr.rel (%p174) target = $region16
        $region15: #{tpu_custom_call.1} parent=11 // pred_region
          %178 = vsyncadd [#allocation8], 0
          %s180 = sshll.u32 %s1, 4
          %s181 = int_to_ptr.hbm [resolvable:$true] %s180
          %s182 = sshll.u32 [#allocation7], 4
          %s183 = int_to_ptr.vmem [resolvable:$true] %s182
          %185 = dma.hbm_to_vmem [thread:$0]  %s181, 256, %s183, [#allocation8]
        $region16: #{tpu_custom_call.1} parent=11 // pred_fallthru
          _
      $region12: #{tpu_custom_call.1} parent=5 // pred_fallthru
        _
      %p186 = scmp.lt.s32.totalorder %s18, 4
      // Predicated region
      $region17: #{tpu_custom_call.1} parent=5 // pred_check
        %p187 = pneg %p186
      $region18: #{tpu_custom_call.1} parent=5 // pred_check_branch
        %189 = sbr.rel (%p187) target = $region20
      $region19: #{tpu_custom_call.1} parent=5 // pred_region
        // Predicated region
        $region21: #{tpu_custom_call.1} parent=19 // pred_check
          %p190 = pneg %p50
        $region22: #{tpu_custom_call.1} parent=19 // pred_check_branch
          %192 = sbr.rel (%p190) target = $region24
        $region23: #{tpu_custom_call.1} parent=19 // pred_region
          %s193 = sand.u32 %s18, 1
          %s194 = scalar_lea.sflag [#allocation5], %s193
          %s195 = sand.u32 %s40, 1
          %s196 = smul.addr %s195, 80
          %s197 = scalar_lea.vmem [#allocation4], %s196
          %199 = vsyncadd %s194, 0
          %s200 = smul.addr %s25, 20
          %s201 = smul.addr %s200, 4
          %s202 = scalar_lea.hbm %s0, %s201
          %s203 = sshll.u32 %s202, 4
          %s204 = int_to_ptr.hbm [resolvable:$true] %s203
          %s205 = sshll.u32 %s197, 4
          %s206 = int_to_ptr.vmem [resolvable:$true] %s205
          %211 = dma.hbm_to_vmem [thread:$0]  %s204, 1280, %s206, %s194, 640, 640, 40
        $region24: #{tpu_custom_call.1} parent=19 // pred_fallthru
          _
        // Predicated region
        $region25: #{tpu_custom_call.1} parent=19 // pred_check
          %p212 = pneg %p97
        $region26: #{tpu_custom_call.1} parent=19 // pred_check_branch
          %214 = sbr.rel (%p212) target = $region28
        $region27: #{tpu_custom_call.1} parent=19 // pred_region
          %s215 = sand.u32 %s18, 1
          %s216 = scalar_lea.sflag [#allocation5], %s215
          %s217 = sand.u32 %s87, 1
          %s218 = smul.addr %s217, 4
          %s219 = scalar_lea.vmem [#allocation9], %s218
          %s220 = smul.u32 4, %s26
          %222 = vsyncadd %s216, 0
          %s223 = scalar_lea.hbm %s2, %s220
          %s225 = sshll.u32 %s223, 4
          %s226 = int_to_ptr.hbm [resolvable:$true] %s225
          %s227 = sshll.u32 %s219, 4
          %s228 = int_to_ptr.vmem [resolvable:$true] %s227
          %230 = dma.hbm_to_vmem [thread:$0]  %s226, 64, %s228, %s216
        $region28: #{tpu_custom_call.1} parent=19 // pred_fallthru
          _
      $region20: #{tpu_custom_call.1} parent=5 // pred_fallthru
        _
      %p231 = scmp.le.s32.totalorder 1, %s18
      %p232 = scmp.lt.s32.totalorder %s18, 5
      %p233 = pnand %p231, %p232
      %p234 = pneg %p233
      // Predicated region
      $region29: #{tpu_custom_call.1} parent=5 // pred_check
        _
      $region30: #{tpu_custom_call.1} parent=5 // pred_check_branch
        %236 = sbr.rel (%p233) target = $region32
      $region31: #{tpu_custom_call.1} parent=5 // pred_region
        %s237 = ssub.s32 %s18, 1
        %s238 = sand.u32 %s23, 1
        %s239 = scalar_lea.sflag [#allocation5], %s238
        %s240 = sand.u32 %s43, 1
        %s241 = smul.addr %s240, 80
        %s242 = scalar_lea.vmem [#allocation4], %s241
        // Predicated region
        $region33: #{tpu_custom_call.1} parent=31 // pred_check
          %p243 = pneg %p56
        $region34: #{tpu_custom_call.1} parent=31 // pred_check_branch
          %245 = sbr.rel (%p243) target = $region36
        $region35: #{tpu_custom_call.1} parent=31 // pred_region
          %247 = dma.done %s239, 1280
        $region36: #{tpu_custom_call.1} parent=31 // pred_fallthru
          _
        // Predicated region
        $region37: #{tpu_custom_call.1} parent=31 // pred_check
          %p248 = pneg %p77
        $region38: #{tpu_custom_call.1} parent=31 // pred_check_branch
          %250 = sbr.rel (%p248) target = $region40
        $region39: #{tpu_custom_call.1} parent=31 // pred_region
          %252 = dma.done [#allocation8], 256
        $region40: #{tpu_custom_call.1} parent=31 // pred_fallthru
          _
        %s253 = sand.u32 %s23, 1
        %s254 = scalar_lea.sflag [#allocation5], %s253
        %s255 = sand.u32 %s90, 1
        %s256 = smul.addr %s255, 4
        %s257 = scalar_lea.vmem [#allocation9], %s256
        // Predicated region
        $region41: #{tpu_custom_call.1} parent=31 // pred_check
          %p258 = pneg %p103
        $region42: #{tpu_custom_call.1} parent=31 // pred_check_branch
          %260 = sbr.rel (%p258) target = $region44
        $region43: #{tpu_custom_call.1} parent=31 // pred_region
          %262 = dma.done %s254, 64
        $region44: #{tpu_custom_call.1} parent=31 // pred_fallthru
          _
        %s263 = sand.u32 %s23, 1
        %s264 = scalar_lea.sflag [#allocation5], %s263
        %s265 = sand.u32 %s43, 1
        %s266 = smul.addr %s265, 80
        %s267 = scalar_lea.vmem [#allocation4], %s266
        %p268 = pneg %p56
        %p269 = pneg %p53
        %p270 = pneg %p77
        %p271 = pneg %p74
        %s272 = sand.u32 %s23, 1
        %s273 = scalar_lea.sflag [#allocation5], %s272
        %s274 = sand.u32 %s90, 1
        %s275 = smul.addr %s274, 4
        %s276 = scalar_lea.vmem [#allocation9], %s275
        %p277 = pneg %p103
        %p278 = pneg %p100
        %p279 = pneg %p131
        %p280 = pneg %p128
        %s281 = sand.u32 %s118, 1
        %s282 = scalar_lea.sflag [#allocation6], %s281
        %s283 = sand.u32 %s118, 1
        %s284 = smul.addr %s283, 16
        %s285 = scalar_lea.vmem [#allocation10], %s284
        %p286 = pneg %p159
        %p287 = pneg %p156
        %p288 = scmp.lt.s32.totalorder %s27, 1
        %s289 = scalar_select %p288, %s27, 1
        %p290 = scmp.lt.s32.totalorder %s28, 1
        %s291 = scalar_select %p290, %s28, 1
        %s292 = smul.addr %s289, 2
        %s293 = sadd.s32 %s291, %s292
        %s294 = smul.addr %s293, 8
        %s295 = scalar_lea.vmem %s4, %s294
        %s296 = smul.u32 4, %s28
        %s297 = smul.u32 4, %s28
        %p298 = scmp.lt.s32.totalorder %s27, 1
        %s299 = scalar_select %p298, %s27, 1
        %p300 = scmp.lt.s32.totalorder %s28, 1
        %s301 = scalar_select %p300, %s28, 1
        %s302 = smul.addr %s299, 2
        %s303 = sadd.s32 %s301, %s302
        %s304 = smul.addr %s303, 8
        %s305 = scalar_lea.vmem %s4, %s304
        %s307 = smul.u32 %s28, 512
        %s308 = sshra.s32 %s307, 7
        %s309 = sand.u32 %s307, 127
        %s310 = smul.addr %s308, 4
        %s311 = scalar_lea.vmem %s242, %s310 [#allocation4]
        %v312 = vld [vmem:[%s311] sm:$0xff]
        %v313 = vld [vmem:[%s311 + $0x8] sm:$0xff]
        %v314 = vld [vmem:[%s311 + $0x10] sm:$0xff]
        %v315 = vld [vmem:[%s311 + $0x28] sm:$0xff]
        %v316 = vld [vmem:[%s311 + $0x30] sm:$0xff]
        %v317 = vld [vmem:[%s311 + $0x38] sm:$0xff]
        %318 = vst [vmem:[#allocation2] sm:$0xff] %v312
        %319 = vst [vmem:[#allocation2 + $0x8] sm:$0xff] %v313
        %vm320 = vcmask 1043456
        %vm321 = vcmask 769028
        %vm322 = vmor %vm321, %vm320
        %323 = vst.msk [vmem:[#allocation2 + $0x10] sm:$0xff] %vm322, %v314
        %324 = vst [vmem:[#allocation2 + $0x18] sm:$0xff] %v315
        %325 = vst [vmem:[#allocation2 + $0x20] sm:$0xff] %v316
        %326 = vst.msk [vmem:[#allocation2 + $0x28] sm:$0xff] %vm322, %v317
        %v327 = vld [vmem:[#allocation2] sm:$0xff]
        %v328 = vld [vmem:[#allocation2 + $0x8] sm:$0xff]
        %v329 = vld [vmem:[#allocation2 + $0x18] sm:$0xff]
        %v330 = vld [vmem:[#allocation2 + $0x20] sm:$0xff]
        %331 = vst [vmem:[#allocation3] sm:$0xff] %v327
        %332 = vst [vmem:[#allocation3 + $0x8] sm:$0xff] %v328
        %333 = vst [vmem:[#allocation3 + $0x10] sm:$0xff] %v329
        %334 = vst [vmem:[#allocation3 + $0x18] sm:$0xff] %v330
        %v335 = vld [vmem:[#allocation2] sm:$0xff]
        %v336 = vld [vmem:[#allocation2 + $0x8] sm:$0xff]
        %v337 = vld [vmem:[#allocation2 + $0x10] sm:$0xf]
        %v338 = vld [vmem:[#allocation2 + $0x18] sm:$0xff]
        %v339 = vld [vmem:[#allocation2 + $0x20] sm:$0xff]
        %v340 = vld [vmem:[#allocation2 + $0x28] sm:$0xf]
        %347 = vrot.lane.b32.xlu0 %v335, 127
        %v348 = vpop.permute.xlu0 %347
        %349 = vrot.lane.b32.xlu0 %v336, 127
        %v350 = vpop.permute.xlu0 %349
        %351 = vrot.lane.b32.xlu0 %v337, 127
        %v352 = vpop.permute.xlu0 %351
        %353 = vrot.lane.b32.xlu0 %v338, 127
        %v354 = vpop.permute.xlu0 %353
        %355 = vrot.lane.b32.xlu0 %v339, 127
        %v356 = vpop.permute.xlu0 %355
        %357 = vrot.lane.b32.xlu0 %v340, 127
        %v358 = vpop.permute.xlu0 %357
        %v359 = vrot.slane %v348, 4
        %v360 = vrot.slane %v350, 4
        %v361 = vrot.slane %v352, 4
        %v362 = vrot.slane %v354, 4
        %v363 = vrot.slane %v356, 4
        %v364 = vrot.slane %v358, 4
        %vm365 = vcmask 1043456
        %v366 = vsel %vm365, %v359, %v360
        %vm367 = vcmask 1039360
        %v368 = vsel %vm367, %v348, %v366
        %v369 = vsel %vm365, %v360, %v361
        %v370 = vsel %vm367, %v350, %v369
        %v371 = vsel %vm365, %v362, %v363
        %v372 = vsel %vm367, %v354, %v371
        %v373 = vsel %vm365, %v363, %v364
        %v374 = vsel %vm367, %v356, %v373
        %379 = vst [vmem:[#allocation3 + $0x20] sm:$0xff] %v368
        %380 = vst [vmem:[#allocation3 + $0x28] sm:$0xff] %v370
        %381 = vst [vmem:[#allocation3 + $0x30] sm:$0xff] %v372
        %382 = vst [vmem:[#allocation3 + $0x38] sm:$0xff] %v374
        %v383 = vld [vmem:[#allocation2] sm:$0xff]
        %v384 = vld [vmem:[#allocation2 + $0x8] sm:$0xff]
        %v385 = vld [vmem:[#allocation2 + $0x10] sm:$0xf]
        %v386 = vld [vmem:[#allocation2 + $0x18] sm:$0xff]
        %v387 = vld [vmem:[#allocation2 + $0x20] sm:$0xff]
        %v388 = vld [vmem:[#allocation2 + $0x28] sm:$0xf]
        %395 = vrot.lane.b32.xlu0 %v383, 126
        %v396 = vpop.permute.xlu0 %395
        %397 = vrot.lane.b32.xlu0 %v384, 126
        %v398 = vpop.permute.xlu0 %397
        %399 = vrot.lane.b32.xlu0 %v385, 126
        %v400 = vpop.permute.xlu0 %399
        %401 = vrot.lane.b32.xlu0 %v386, 126
        %v402 = vpop.permute.xlu0 %401
        %403 = vrot.lane.b32.xlu0 %v387, 126
        %v404 = vpop.permute.xlu0 %403
        %405 = vrot.lane.b32.xlu0 %v388, 126
        %v406 = vpop.permute.xlu0 %405
        %v407 = vrot.slane %v396, 4
        %v408 = vrot.slane %v398, 4
        %v409 = vrot.slane %v400, 4
        %v410 = vrot.slane %v402, 4
        %v411 = vrot.slane %v404, 4
        %v412 = vrot.slane %v406, 4
        %v413 = vsel %vm365, %v407, %v408
        %vm414 = vcmask 1031168
        %v415 = vsel %vm414, %v396, %v413
        %v416 = vsel %vm365, %v408, %v409
        %v417 = vsel %vm414, %v398, %v416
        %v418 = vsel %vm365, %v410, %v411
        %v419 = vsel %vm414, %v402, %v418
        %v420 = vsel %vm365, %v411, %v412
        %v421 = vsel %vm414, %v404, %v420
        %426 = vst [vmem:[#allocation3 + $0x40] sm:$0xff] %v415
        %427 = vst [vmem:[#allocation3 + $0x48] sm:$0xff] %v417
        %428 = vst [vmem:[#allocation3 + $0x50] sm:$0xff] %v419
        %429 = vst [vmem:[#allocation3 + $0x58] sm:$0xff] %v421
        %v430 = vld [vmem:[#allocation2] sm:$0xff]
        %v431 = vld [vmem:[#allocation2 + $0x8] sm:$0xff]
        %v432 = vld [vmem:[#allocation2 + $0x10] sm:$0xf]
        %v433 = vld [vmem:[#allocation2 + $0x18] sm:$0xff]
        %v434 = vld [vmem:[#allocation2 + $0x20] sm:$0xff]
        %v435 = vld [vmem:[#allocation2 + $0x28] sm:$0xf]
        %442 = vrot.lane.b32.xlu0 %v430, 118
        %v443 = vpop.permute.xlu0 %442
        %444 = vrot.lane.b32.xlu0 %v431, 118
        %v445 = vpop.permute.xlu0 %444
        %446 = vrot.lane.b32.xlu0 %v432, 118
        %v447 = vpop.permute.xlu0 %446
        %448 = vrot.lane.b32.xlu0 %v433, 118
        %v449 = vpop.permute.xlu0 %448
        %450 = vrot.lane.b32.xlu0 %v434, 118
        %v451 = vpop.permute.xlu0 %450
        %452 = vrot.lane.b32.xlu0 %v435, 118
        %v453 = vpop.permute.xlu0 %452
        %v454 = vrot.slane %v443, 4
        %v455 = vrot.slane %v445, 4
        %v456 = vrot.slane %v447, 4
        %v457 = vrot.slane %v449, 4
        %v458 = vrot.slane %v451, 4
        %v459 = vrot.slane %v453, 4
        %v460 = vsel %vm365, %v454, %v455
        %vm461 = vcmask 965632
        %v462 = vsel %vm461, %v443, %v460
        %v463 = vsel %vm365, %v455, %v456
        %v464 = vsel %vm461, %v445, %v463
        %v465 = vsel %vm365, %v457, %v458
        %v466 = vsel %vm461, %v449, %v465
        %v467 = vsel %vm365, %v458, %v459
        %v468 = vsel %vm461, %v451, %v467
        %473 = vst [vmem:[#allocation3 + $0x60] sm:$0xff] %v462
        %474 = vst [vmem:[#allocation3 + $0x68] sm:$0xff] %v464
        %475 = vst [vmem:[#allocation3 + $0x70] sm:$0xff] %v466
        %476 = vst [vmem:[#allocation3 + $0x78] sm:$0xff] %v468
        %v477 = vld [vmem:[#allocation2] sm:$0xff]
        %v478 = vld [vmem:[#allocation2 + $0x8] sm:$0xff]
        %v479 = vld [vmem:[#allocation2 + $0x10] sm:$0xf]
        %v480 = vld [vmem:[#allocation2 + $0x18] sm:$0xff]
        %v481 = vld [vmem:[#allocation2 + $0x20] sm:$0xff]
        %v482 = vld [vmem:[#allocation2 + $0x28] sm:$0xf]
        %489 = vrot.lane.b32.xlu0 %v477, 117
        %v490 = vpop.permute.xlu0 %489
        %491 = vrot.lane.b32.xlu0 %v478, 117
        %v492 = vpop.permute.xlu0 %491
        %493 = vrot.lane.b32.xlu0 %v479, 117
        %v494 = vpop.permute.xlu0 %493
        %495 = vrot.lane.b32.xlu0 %v480, 117
        %v496 = vpop.permute.xlu0 %495
        %497 = vrot.lane.b32.xlu0 %v481, 117
        %v498 = vpop.permute.xlu0 %497
        %499 = vrot.lane.b32.xlu0 %v482, 117
        %v500 = vpop.permute.xlu0 %499
        %v501 = vrot.slane %v490, 4
        %v502 = vrot.slane %v492, 4
        %v503 = vrot.slane %v494, 4
        %v504 = vrot.slane %v496, 4
        %v505 = vrot.slane %v498, 4
        %v506 = vrot.slane %v500, 4
        %v507 = vsel %vm365, %v501, %v502
        %vm508 = vcmask 957440
        %v509 = vsel %vm508, %v490, %v507
        %v510 = vsel %vm365, %v502, %v503
        %v511 = vsel %vm508, %v492, %v510
        %v512 = vsel %vm365, %v504, %v505
        %v513 = vsel %vm508, %v496, %v512
        %v514 = vsel %vm365, %v505, %v506
        %v515 = vsel %vm508, %v498, %v514
        %520 = vst [vmem:[#allocation3 + $0x80] sm:$0xff] %v509
        %521 = vst [vmem:[#allocation3 + $0x88] sm:$0xff] %v511
        %522 = vst [vmem:[#allocation3 + $0x90] sm:$0xff] %v513
        %523 = vst [vmem:[#allocation3 + $0x98] sm:$0xff] %v515
        %v524 = vld [vmem:[#allocation2] sm:$0xff]
        %v525 = vld [vmem:[#allocation2 + $0x8] sm:$0xff]
        %v526 = vld [vmem:[#allocation2 + $0x10] sm:$0xf]
        %v527 = vld [vmem:[#allocation2 + $0x18] sm:$0xff]
        %v528 = vld [vmem:[#allocation2 + $0x20] sm:$0xff]
        %v529 = vld [vmem:[#allocation2 + $0x28] sm:$0xf]
        %536 = vrot.lane.b32.xlu0 %v524, 116
        %v537 = vpop.permute.xlu0 %536
        %538 = vrot.lane.b32.xlu0 %v525, 116
        %v539 = vpop.permute.xlu0 %538
        %540 = vrot.lane.b32.xlu0 %v526, 116
        %v541 = vpop.permute.xlu0 %540
        %542 = vrot.lane.b32.xlu0 %v527, 116
        %v543 = vpop.permute.xlu0 %542
        %544 = vrot.lane.b32.xlu0 %v528, 116
        %v545 = vpop.permute.xlu0 %544
        %546 = vrot.lane.b32.xlu0 %v529, 116
        %v547 = vpop.permute.xlu0 %546
        %v548 = vrot.slane %v537, 4
        %v549 = vrot.slane %v539, 4
        %v550 = vrot.slane %v541, 4
        %v551 = vrot.slane %v543, 4
        %v552 = vrot.slane %v545, 4
        %v553 = vrot.slane %v547, 4
        %v554 = vsel %vm365, %v548, %v549
        %vm555 = vcmask 949248
        %v556 = vsel %vm555, %v537, %v554
        %v557 = vsel %vm365, %v549, %v550
        %v558 = vsel %vm555, %v539, %v557
        %v559 = vsel %vm365, %v551, %v552
        %v560 = vsel %vm555, %v543, %v559
        %v561 = vsel %vm365, %v552, %v553
        %v562 = vsel %vm555, %v545, %v561
        %567 = vst [vmem:[#allocation3 + $0xa0] sm:$0xff] %v556
        %568 = vst [vmem:[#allocation3 + $0xa8] sm:$0xff] %v558
        %569 = vst [vmem:[#allocation3 + $0xb0] sm:$0xff] %v560
        %570 = vst [vmem:[#allocation3 + $0xb8] sm:$0xff] %v562
        %v571 = vld [vmem:[#allocation2] sm:$0xff]
        %v572 = vld [vmem:[#allocation2 + $0x8] sm:$0xff]
        %v573 = vld [vmem:[#allocation2 + $0x10] sm:$0xf]
        %v574 = vld [vmem:[#allocation2 + $0x18] sm:$0xff]
        %v575 = vld [vmem:[#allocation2 + $0x20] sm:$0xff]
        %v576 = vld [vmem:[#allocation2 + $0x28] sm:$0xf]
        %583 = vrot.lane.b32.xlu0 %v571, 108
        %v584 = vpop.permute.xlu0 %583
        %585 = vrot.lane.b32.xlu0 %v572, 108
        %v586 = vpop.permute.xlu0 %585
        %587 = vrot.lane.b32.xlu0 %v573, 108
        %v588 = vpop.permute.xlu0 %587
        %589 = vrot.lane.b32.xlu0 %v574, 108
        %v590 = vpop.permute.xlu0 %589
        %591 = vrot.lane.b32.xlu0 %v575, 108
        %v592 = vpop.permute.xlu0 %591
        %593 = vrot.lane.b32.xlu0 %v576, 108
        %v594 = vpop.permute.xlu0 %593
        %v595 = vrot.slane %v584, 4
        %v596 = vrot.slane %v586, 4
        %v597 = vrot.slane %v588, 4
        %v598 = vrot.slane %v590, 4
        %v599 = vrot.slane %v592, 4
        %v600 = vrot.slane %v594, 4
        %v601 = vsel %vm365, %v595, %v596
        %vm602 = vcmask 883712
        %v603 = vsel %vm602, %v584, %v601
        %v604 = vsel %vm365, %v596, %v597
        %v605 = vsel %vm602, %v586, %v604
        %v606 = vsel %vm365, %v598, %v599
        %v607 = vsel %vm602, %v590, %v606
        %v608 = vsel %vm365, %v599, %v600
        %v609 = vsel %vm602, %v592, %v608
        %614 = vst [vmem:[#allocation3 + $0xc0] sm:$0xff] %v603
        %615 = vst [vmem:[#allocation3 + $0xc8] sm:$0xff] %v605
        %616 = vst [vmem:[#allocation3 + $0xd0] sm:$0xff] %v607
        %617 = vst [vmem:[#allocation3 + $0xd8] sm:$0xff] %v609
        %v618 = vld [vmem:[#allocation2] sm:$0xff]
        %v619 = vld [vmem:[#allocation2 + $0x8] sm:$0xff]
        %v620 = vld [vmem:[#allocation2 + $0x10] sm:$0xf]
        %v621 = vld [vmem:[#allocation2 + $0x18] sm:$0xff]
        %v622 = vld [vmem:[#allocation2 + $0x20] sm:$0xff]
        %v623 = vld [vmem:[#allocation2 + $0x28] sm:$0xf]
        %630 = vrot.lane.b32.xlu0 %v618, 107
        %v631 = vpop.permute.xlu0 %630
        %632 = vrot.lane.b32.xlu0 %v619, 107
        %v633 = vpop.permute.xlu0 %632
        %634 = vrot.lane.b32.xlu0 %v620, 107
        %v635 = vpop.permute.xlu0 %634
        %636 = vrot.lane.b32.xlu0 %v621, 107
        %v637 = vpop.permute.xlu0 %636
        %638 = vrot.lane.b32.xlu0 %v622, 107
        %v639 = vpop.permute.xlu0 %638
        %640 = vrot.lane.b32.xlu0 %v623, 107
        %v641 = vpop.permute.xlu0 %640
        %v642 = vrot.slane %v631, 4
        %v643 = vrot.slane %v633, 4
        %v644 = vrot.slane %v635, 4
        %v645 = vrot.slane %v637, 4
        %v646 = vrot.slane %v639, 4
        %v647 = vrot.slane %v641, 4
        %v648 = vsel %vm365, %v642, %v643
        %vm649 = vcmask 875520
        %v650 = vsel %vm649, %v631, %v648
        %v651 = vsel %vm365, %v643, %v644
        %v652 = vsel %vm649, %v633, %v651
        %v653 = vsel %vm365, %v645, %v646
        %v654 = vsel %vm649, %v637, %v653
        %v655 = vsel %vm365, %v646, %v647
        %v656 = vsel %vm649, %v639, %v655
        %661 = vst [vmem:[#allocation3 + $0xe0] sm:$0xff] %v650
        %662 = vst [vmem:[#allocation3 + $0xe8] sm:$0xff] %v652
        %663 = vst [vmem:[#allocation3 + $0xf0] sm:$0xff] %v654
        %664 = vst [vmem:[#allocation3 + $0xf8] sm:$0xff] %v656
        %v665 = vld [vmem:[#allocation2] sm:$0xff]
        %v666 = vld [vmem:[#allocation2 + $0x8] sm:$0xff]
        %v667 = vld [vmem:[#allocation2 + $0x10] sm:$0xf]
        %v668 = vld [vmem:[#allocation2 + $0x18] sm:$0xff]
        %v669 = vld [vmem:[#allocation2 + $0x20] sm:$0xff]
        %v670 = vld [vmem:[#allocation2 + $0x28] sm:$0xf]
        %677 = vrot.lane.b32.xlu0 %v665, 106
        %v678 = vpop.permute.xlu0 %677
        %679 = vrot.lane.b32.xlu0 %v666, 106
        %v680 = vpop.permute.xlu0 %679
        %681 = vrot.lane.b32.xlu0 %v667, 106
        %v682 = vpop.permute.xlu0 %681
        %683 = vrot.lane.b32.xlu0 %v668, 106
        %v684 = vpop.permute.xlu0 %683
        %685 = vrot.lane.b32.xlu0 %v669, 106
        %v686 = vpop.permute.xlu0 %685
        %687 = vrot.lane.b32.xlu0 %v670, 106
        %v688 = vpop.permute.xlu0 %687
        %v689 = vrot.slane %v678, 4
        %v690 = vrot.slane %v680, 4
        %v691 = vrot.slane %v682, 4
        %v692 = vrot.slane %v684, 4
        %v693 = vrot.slane %v686, 4
        %v694 = vrot.slane %v688, 4
        %v695 = vsel %vm365, %v689, %v690
        %vm696 = vcmask 867328
        %v697 = vsel %vm696, %v678, %v695
        %v698 = vsel %vm365, %v690, %v691
        %v699 = vsel %vm696, %v680, %v698
        %v700 = vsel %vm365, %v692, %v693
        %v701 = vsel %vm696, %v684, %v700
        %v702 = vsel %vm365, %v693, %v694
        %v703 = vsel %vm696, %v686, %v702
        %708 = vst [vmem:[#allocation3 + $0x100] sm:$0xff] %v697
        %709 = vst [vmem:[#allocation3 + $0x108] sm:$0xff] %v699
        %710 = vst [vmem:[#allocation3 + $0x110] sm:$0xff] %v701
        %711 = vst [vmem:[#allocation3 + $0x118] sm:$0xff] %v703
        %v712 = vld [vmem:[#allocation2] sm:$0xff]
        %v713 = vld [vmem:[#allocation2 + $0x8] sm:$0xff]
        %v714 = vld [vmem:[#allocation2 + $0x10] sm:$0xf]
        %v715 = vld [vmem:[#allocation2 + $0x18] sm:$0xff]
        %v716 = vld [vmem:[#allocation2 + $0x20] sm:$0xff]
        %v717 = vld [vmem:[#allocation2 + $0x28] sm:$0xf]
        %724 = vrot.lane.b32.xlu0 %v712, 28
        %v725 = vpop.permute.xlu0 %724
        %726 = vrot.lane.b32.xlu0 %v713, 28
        %v727 = vpop.permute.xlu0 %726
        %728 = vrot.lane.b32.xlu0 %v714, 28
        %v729 = vpop.permute.xlu0 %728
        %730 = vrot.lane.b32.xlu0 %v715, 28
        %v731 = vpop.permute.xlu0 %730
        %732 = vrot.lane.b32.xlu0 %v716, 28
        %v733 = vpop.permute.xlu0 %732
        %734 = vrot.lane.b32.xlu0 %v717, 28
        %v735 = vpop.permute.xlu0 %734
        %v736 = vrot.slane %v725, 4
        %v737 = vrot.slane %v727, 4
        %v738 = vrot.slane %v729, 4
        %v739 = vrot.slane %v731, 4
        %v740 = vrot.slane %v733, 4
        %v741 = vrot.slane %v735, 4
        %v742 = vsel %vm365, %v736, %v737
        %vm743 = vcmask 228352
        %v744 = vsel %vm743, %v725, %v742
        %v745 = vsel %vm365, %v737, %v738
        %v746 = vsel %vm743, %v727, %v745
        %v747 = vsel %vm365, %v739, %v740
        %v748 = vsel %vm743, %v731, %v747
        %v749 = vsel %vm365, %v740, %v741
        %v750 = vsel %vm743, %v733, %v749
        %755 = vst [vmem:[#allocation3 + $0x120] sm:$0xff] %v744
        %756 = vst [vmem:[#allocation3 + $0x128] sm:$0xff] %v746
        %757 = vst [vmem:[#allocation3 + $0x130] sm:$0xff] %v748
        %758 = vst [vmem:[#allocation3 + $0x138] sm:$0xff] %v750
        %v759 = vld [vmem:[#allocation2] sm:$0xff]
        %v760 = vld [vmem:[#allocation2 + $0x8] sm:$0xff]
        %v761 = vld [vmem:[#allocation2 + $0x10] sm:$0xf]
        %v762 = vld [vmem:[#allocation2 + $0x18] sm:$0xff]
        %v763 = vld [vmem:[#allocation2 + $0x20] sm:$0xff]
        %v764 = vld [vmem:[#allocation2 + $0x28] sm:$0xf]
        %771 = vrot.lane.b32.xlu0 %v759, 27
        %v772 = vpop.permute.xlu0 %771
        %773 = vrot.lane.b32.xlu0 %v760, 27
        %v774 = vpop.permute.xlu0 %773
        %775 = vrot.lane.b32.xlu0 %v761, 27
        %v776 = vpop.permute.xlu0 %775
        %777 = vrot.lane.b32.xlu0 %v762, 27
        %v778 = vpop.permute.xlu0 %777
        %779 = vrot.lane.b32.xlu0 %v763, 27
        %v780 = vpop.permute.xlu0 %779
        %781 = vrot.lane.b32.xlu0 %v764, 27
        %v782 = vpop.permute.xlu0 %781
        %v783 = vrot.slane %v772, 4
        %v784 = vrot.slane %v774, 4
        %v785 = vrot.slane %v776, 4
        %v786 = vrot.slane %v778, 4
        %v787 = vrot.slane %v780, 4
        %v788 = vrot.slane %v782, 4
        %v789 = vsel %vm365, %v783, %v784
        %vm790 = vcmask 220160
        %v791 = vsel %vm790, %v772, %v789
        %v792 = vsel %vm365, %v784, %v785
        %v793 = vsel %vm790, %v774, %v792
        %v794 = vsel %vm365, %v786, %v787
        %v795 = vsel %vm790, %v778, %v794
        %v796 = vsel %vm365, %v787, %v788
        %v797 = vsel %vm790, %v780, %v796
        %802 = vst [vmem:[#allocation3 + $0x140] sm:$0xff] %v791
        %803 = vst [vmem:[#allocation3 + $0x148] sm:$0xff] %v793
        %804 = vst [vmem:[#allocation3 + $0x150] sm:$0xff] %v795
        %805 = vst [vmem:[#allocation3 + $0x158] sm:$0xff] %v797
        %v806 = vld [vmem:[#allocation2] sm:$0xff]
        %v807 = vld [vmem:[#allocation2 + $0x8] sm:$0xff]
        %v808 = vld [vmem:[#allocation2 + $0x10] sm:$0xf]
        %v809 = vld [vmem:[#allocation2 + $0x18] sm:$0xff]
        %v810 = vld [vmem:[#allocation2 + $0x20] sm:$0xff]
        %v811 = vld [vmem:[#allocation2 + $0x28] sm:$0xf]
        %818 = vrot.lane.b32.xlu0 %v806, 26
        %v819 = vpop.permute.xlu0 %818
        %820 = vrot.lane.b32.xlu0 %v807, 26
        %v821 = vpop.permute.xlu0 %820
        %822 = vrot.lane.b32.xlu0 %v808, 26
        %v823 = vpop.permute.xlu0 %822
        %824 = vrot.lane.b32.xlu0 %v809, 26
        %v825 = vpop.permute.xlu0 %824
        %826 = vrot.lane.b32.xlu0 %v810, 26
        %v827 = vpop.permute.xlu0 %826
        %828 = vrot.lane.b32.xlu0 %v811, 26
        %v829 = vpop.permute.xlu0 %828
        %v830 = vrot.slane %v819, 4
        %v831 = vrot.slane %v821, 4
        %v832 = vrot.slane %v823, 4
        %v833 = vrot.slane %v825, 4
        %v834 = vrot.slane %v827, 4
        %v835 = vrot.slane %v829, 4
        %v836 = vsel %vm365, %v830, %v831
        %vm837 = vcmask 211968
        %v838 = vsel %vm837, %v819, %v836
        %v839 = vsel %vm365, %v831, %v832
        %v840 = vsel %vm837, %v821, %v839
        %v841 = vsel %vm365, %v833, %v834
        %v842 = vsel %vm837, %v825, %v841
        %v843 = vsel %vm365, %v834, %v835
        %v844 = vsel %vm837, %v827, %v843
        %849 = vst [vmem:[#allocation3 + $0x160] sm:$0xff] %v838
        %850 = vst [vmem:[#allocation3 + $0x168] sm:$0xff] %v840
        %851 = vst [vmem:[#allocation3 + $0x170] sm:$0xff] %v842
        %852 = vst [vmem:[#allocation3 + $0x178] sm:$0xff] %v844
        %v853 = vld [vmem:[#allocation2] sm:$0xff]
        %v854 = vld [vmem:[#allocation2 + $0x8] sm:$0xff]
        %v855 = vld [vmem:[#allocation2 + $0x10] sm:$0xf]
        %v856 = vld [vmem:[#allocation2 + $0x18] sm:$0xff]
        %v857 = vld [vmem:[#allocation2 + $0x20] sm:$0xff]
        %v858 = vld [vmem:[#allocation2 + $0x28] sm:$0xf]
        %865 = vrot.lane.b32.xlu0 %v853, 18
        %v866 = vpop.permute.xlu0 %865
        %867 = vrot.lane.b32.xlu0 %v854, 18
        %v868 = vpop.permute.xlu0 %867
        %869 = vrot.lane.b32.xlu0 %v855, 18
        %v870 = vpop.permute.xlu0 %869
        %871 = vrot.lane.b32.xlu0 %v856, 18
        %v872 = vpop.permute.xlu0 %871
        %873 = vrot.lane.b32.xlu0 %v857, 18
        %v874 = vpop.permute.xlu0 %873
        %875 = vrot.lane.b32.xlu0 %v858, 18
        %v876 = vpop.permute.xlu0 %875
        %v877 = vrot.slane %v866, 4
        %v878 = vrot.slane %v868, 4
        %v879 = vrot.slane %v870, 4
        %v880 = vrot.slane %v872, 4
        %v881 = vrot.slane %v874, 4
        %v882 = vrot.slane %v876, 4
        %v883 = vsel %vm365, %v877, %v878
        %vm884 = vcmask 146432
        %v885 = vsel %vm884, %v866, %v883
        %v886 = vsel %vm365, %v878, %v879
        %v887 = vsel %vm884, %v868, %v886
        %v888 = vsel %vm365, %v880, %v881
        %v889 = vsel %vm884, %v872, %v888
        %v890 = vsel %vm365, %v881, %v882
        %v891 = vsel %vm884, %v874, %v890
        %896 = vst [vmem:[#allocation3 + $0x180] sm:$0xff] %v885
        %897 = vst [vmem:[#allocation3 + $0x188] sm:$0xff] %v887
        %898 = vst [vmem:[#allocation3 + $0x190] sm:$0xff] %v889
        %899 = vst [vmem:[#allocation3 + $0x198] sm:$0xff] %v891
        %v900 = vld [vmem:[#allocation2] sm:$0xff]
        %v901 = vld [vmem:[#allocation2 + $0x8] sm:$0xff]
        %v902 = vld [vmem:[#allocation2 + $0x10] sm:$0xf]
        %v903 = vld [vmem:[#allocation2 + $0x18] sm:$0xff]
        %v904 = vld [vmem:[#allocation2 + $0x20] sm:$0xff]
        %v905 = vld [vmem:[#allocation2 + $0x28] sm:$0xf]
        %912 = vrot.lane.b32.xlu0 %v900, 17
        %v913 = vpop.permute.xlu0 %912
        %914 = vrot.lane.b32.xlu0 %v901, 17
        %v915 = vpop.permute.xlu0 %914
        %916 = vrot.lane.b32.xlu0 %v902, 17
        %v917 = vpop.permute.xlu0 %916
        %918 = vrot.lane.b32.xlu0 %v903, 17
        %v919 = vpop.permute.xlu0 %918
        %920 = vrot.lane.b32.xlu0 %v904, 17
        %v921 = vpop.permute.xlu0 %920
        %922 = vrot.lane.b32.xlu0 %v905, 17
        %v923 = vpop.permute.xlu0 %922
        %v924 = vrot.slane %v913, 4
        %v925 = vrot.slane %v915, 4
        %v926 = vrot.slane %v917, 4
        %v927 = vrot.slane %v919, 4
        %v928 = vrot.slane %v921, 4
        %v929 = vrot.slane %v923, 4
        %v930 = vsel %vm365, %v924, %v925
        %vm931 = vcmask 138240
        %v932 = vsel %vm931, %v913, %v930
        %v933 = vsel %vm365, %v925, %v926
        %v934 = vsel %vm931, %v915, %v933
        %v935 = vsel %vm365, %v927, %v928
        %v936 = vsel %vm931, %v919, %v935
        %v937 = vsel %vm365, %v928, %v929
        %v938 = vsel %vm931, %v921, %v937
        %943 = vst [vmem:[#allocation3 + $0x1a0] sm:$0xff] %v932
        %944 = vst [vmem:[#allocation3 + $0x1a8] sm:$0xff] %v934
        %945 = vst [vmem:[#allocation3 + $0x1b0] sm:$0xff] %v936
        %946 = vst [vmem:[#allocation3 + $0x1b8] sm:$0xff] %v938
        %v947 = vld [vmem:[#allocation2] sm:$0xff]
        %v948 = vld [vmem:[#allocation2 + $0x8] sm:$0xff]
        %v949 = vld [vmem:[#allocation2 + $0x10] sm:$0xf]
        %v950 = vld [vmem:[#allocation2 + $0x18] sm:$0xff]
        %v951 = vld [vmem:[#allocation2 + $0x20] sm:$0xff]
        %v952 = vld [vmem:[#allocation2 + $0x28] sm:$0xf]
        %959 = vrot.lane.b32.xlu0 %v947, 16
        %v960 = vpop.permute.xlu0 %959
        %961 = vrot.lane.b32.xlu0 %v948, 16
        %v962 = vpop.permute.xlu0 %961
        %963 = vrot.lane.b32.xlu0 %v949, 16
        %v964 = vpop.permute.xlu0 %963
        %965 = vrot.lane.b32.xlu0 %v950, 16
        %v966 = vpop.permute.xlu0 %965
        %967 = vrot.lane.b32.xlu0 %v951, 16
        %v968 = vpop.permute.xlu0 %967
        %969 = vrot.lane.b32.xlu0 %v952, 16
        %v970 = vpop.permute.xlu0 %969
        %v971 = vrot.slane %v960, 4
        %v972 = vrot.slane %v962, 4
        %v973 = vrot.slane %v964, 4
        %v974 = vrot.slane %v966, 4
        %v975 = vrot.slane %v968, 4
        %v976 = vrot.slane %v970, 4
        %v977 = vsel %vm365, %v971, %v972
        %vm978 = vcmask 130048
        %v979 = vsel %vm978, %v960, %v977
        %v980 = vsel %vm365, %v972, %v973
        %v981 = vsel %vm978, %v962, %v980
        %v982 = vsel %vm365, %v974, %v975
        %v983 = vsel %vm978, %v966, %v982
        %v984 = vsel %vm365, %v975, %v976
        %v985 = vsel %vm978, %v968, %v984
        %990 = vst [vmem:[#allocation3 + $0x1c0] sm:$0xff] %v979
        %991 = vst [vmem:[#allocation3 + $0x1c8] sm:$0xff] %v981
        %992 = vst [vmem:[#allocation3 + $0x1d0] sm:$0xff] %v983
        %993 = vst [vmem:[#allocation3 + $0x1d8] sm:$0xff] %v985
        %v994 = vld [vmem:[#allocation2] sm:$0xff]
        %v995 = vld [vmem:[#allocation2 + $0x8] sm:$0xff]
        %v996 = vld [vmem:[#allocation2 + $0x10] sm:$0xf]
        %v997 = vld [vmem:[#allocation2 + $0x18] sm:$0xff]
        %v998 = vld [vmem:[#allocation2 + $0x20] sm:$0xff]
        %v999 = vld [vmem:[#allocation2 + $0x28] sm:$0xf]
        %1006 = vrot.lane.b32.xlu0 %v994, 8
        %v1007 = vpop.permute.xlu0 %1006
        %1008 = vrot.lane.b32.xlu0 %v995, 8
        %v1009 = vpop.permute.xlu0 %1008
        %1010 = vrot.lane.b32.xlu0 %v996, 8
        %v1011 = vpop.permute.xlu0 %1010
        %1012 = vrot.lane.b32.xlu0 %v997, 8
        %v1013 = vpop.permute.xlu0 %1012
        %1014 = vrot.lane.b32.xlu0 %v998, 8
        %v1015 = vpop.permute.xlu0 %1014
        %1016 = vrot.lane.b32.xlu0 %v999, 8
        %v1017 = vpop.permute.xlu0 %1016
        %v1018 = vrot.slane %v1007, 4
        %v1019 = vrot.slane %v1009, 4
        %v1020 = vrot.slane %v1011, 4
        %v1021 = vrot.slane %v1013, 4
        %v1022 = vrot.slane %v1015, 4
        %v1023 = vrot.slane %v1017, 4
        %v1024 = vsel %vm365, %v1018, %v1019
        %vm1025 = vcmask 64512
        %v1026 = vsel %vm1025, %v1007, %v1024
        %v1027 = vsel %vm365, %v1019, %v1020
        %v1028 = vsel %vm1025, %v1009, %v1027
        %v1029 = vsel %vm365, %v1021, %v1022
        %v1030 = vsel %vm1025, %v1013, %v1029
        %v1031 = vsel %vm365, %v1022, %v1023
        %v1032 = vsel %vm1025, %v1015, %v1031
        %1037 = vst [vmem:[#allocation3 + $0x1e0] sm:$0xff] %v1026
        %1038 = vst [vmem:[#allocation3 + $0x1e8] sm:$0xff] %v1028
        %1039 = vst [vmem:[#allocation3 + $0x1f0] sm:$0xff] %v1030
        %1040 = vst [vmem:[#allocation3 + $0x1f8] sm:$0xff] %v1032
        %v1041 = vld [vmem:[#allocation2] sm:$0xff]
        %v1042 = vld [vmem:[#allocation2 + $0x8] sm:$0xff]
        %v1043 = vld [vmem:[#allocation2 + $0x10] sm:$0xf]
        %v1044 = vld [vmem:[#allocation2 + $0x18] sm:$0xff]
        %v1045 = vld [vmem:[#allocation2 + $0x20] sm:$0xff]
        %v1046 = vld [vmem:[#allocation2 + $0x28] sm:$0xf]
        %1053 = vrot.lane.b32.xlu0 %v1041, 7
        %v1054 = vpop.permute.xlu0 %1053
        %1055 = vrot.lane.b32.xlu0 %v1042, 7
        %v1056 = vpop.permute.xlu0 %1055
        %1057 = vrot.lane.b32.xlu0 %v1043, 7
        %v1058 = vpop.permute.xlu0 %1057
        %1059 = vrot.lane.b32.xlu0 %v1044, 7
        %v1060 = vpop.permute.xlu0 %1059
        %1061 = vrot.lane.b32.xlu0 %v1045, 7
        %v1062 = vpop.permute.xlu0 %1061
        %1063 = vrot.lane.b32.xlu0 %v1046, 7
        %v1064 = vpop.permute.xlu0 %1063
        %v1065 = vrot.slane %v1054, 4
        %v1066 = vrot.slane %v1056, 4
        %v1067 = vrot.slane %v1058, 4
        %v1068 = vrot.slane %v1060, 4
        %v1069 = vrot.slane %v1062, 4
        %v1070 = vrot.slane %v1064, 4
        %v1071 = vsel %vm365, %v1065, %v1066
        %vm1072 = vcmask 56320
        %v1073 = vsel %vm1072, %v1054, %v1071
        %v1074 = vsel %vm365, %v1066, %v1067
        %v1075 = vsel %vm1072, %v1056, %v1074
        %v1076 = vsel %vm365, %v1068, %v1069
        %v1077 = vsel %vm1072, %v1060, %v1076
        %v1078 = vsel %vm365, %v1069, %v1070
        %v1079 = vsel %vm1072, %v1062, %v1078
        %1084 = vst [vmem:[#allocation3 + $0x200] sm:$0xff] %v1073
        %1085 = vst [vmem:[#allocation3 + $0x208] sm:$0xff] %v1075
        %1086 = vst [vmem:[#allocation3 + $0x210] sm:$0xff] %v1077
        %1087 = vst [vmem:[#allocation3 + $0x218] sm:$0xff] %v1079
        %v1088 = vld [vmem:[#allocation2] sm:$0xff]
        %v1089 = vld [vmem:[#allocation2 + $0x8] sm:$0xff]
        %v1090 = vld [vmem:[#allocation2 + $0x10] sm:$0xf]
        %v1091 = vld [vmem:[#allocation2 + $0x18] sm:$0xff]
        %v1092 = vld [vmem:[#allocation2 + $0x20] sm:$0xff]
        %v1093 = vld [vmem:[#allocation2 + $0x28] sm:$0xf]
        %1100 = vrot.lane.b32.xlu0 %v1088, 6
        %v1101 = vpop.permute.xlu0 %1100
        %1102 = vrot.lane.b32.xlu0 %v1089, 6
        %v1103 = vpop.permute.xlu0 %1102
        %1104 = vrot.lane.b32.xlu0 %v1090, 6
        %v1105 = vpop.permute.xlu0 %1104
        %1106 = vrot.lane.b32.xlu0 %v1091, 6
        %v1107 = vpop.permute.xlu0 %1106
        %1108 = vrot.lane.b32.xlu0 %v1092, 6
        %v1109 = vpop.permute.xlu0 %1108
        %1110 = vrot.lane.b32.xlu0 %v1093, 6
        %v1111 = vpop.permute.xlu0 %1110
        %v1112 = vrot.slane %v1101, 4
        %v1113 = vrot.slane %v1103, 4
        %v1114 = vrot.slane %v1105, 4
        %v1115 = vrot.slane %v1107, 4
        %v1116 = vrot.slane %v1109, 4
        %v1117 = vrot.slane %v1111, 4
        %v1118 = vsel %vm365, %v1112, %v1113
        %vm1119 = vcmask 48128
        %v1120 = vsel %vm1119, %v1101, %v1118
        %v1121 = vsel %vm365, %v1113, %v1114
        %v1122 = vsel %vm1119, %v1103, %v1121
        %v1123 = vsel %vm365, %v1115, %v1116
        %v1124 = vsel %vm1119, %v1107, %v1123
        %v1125 = vsel %vm365, %v1116, %v1117
        %v1126 = vsel %vm1119, %v1109, %v1125
        %1131 = vst [vmem:[#allocation3 + $0x220] sm:$0xff] %v1120
        %1132 = vst [vmem:[#allocation3 + $0x228] sm:$0xff] %v1122
        %1133 = vst [vmem:[#allocation3 + $0x230] sm:$0xff] %v1124
        %1134 = vst [vmem:[#allocation3 + $0x238] sm:$0xff] %v1126
        %v1135 = vld [vmem:[#allocation2 + $0x4] sm:$0xff]
        %v1136 = vld [vmem:[#allocation2 + $0xc] sm:$0xff]
        %v1137 = vld [vmem:[#allocation2 + $0x14] sm:$0xf]
        %v1138 = vld [vmem:[#allocation2 + $0x1c] sm:$0xff]
        %v1139 = vld [vmem:[#allocation2 + $0x24] sm:$0xff]
        %v1140 = vld [vmem:[#allocation2 + $0x2c] sm:$0xf]
        %1147 = vrot.lane.b32.xlu0 %v1135, 56
        %v1148 = vpop.permute.xlu0 %1147
        %1149 = vrot.lane.b32.xlu0 %v1136, 56
        %v1150 = vpop.permute.xlu0 %1149
        %1151 = vrot.lane.b32.xlu0 %v1137, 56
        %v1152 = vpop.permute.xlu0 %1151
        %1153 = vrot.lane.b32.xlu0 %v1138, 56
        %v1154 = vpop.permute.xlu0 %1153
        %1155 = vrot.lane.b32.xlu0 %v1139, 56
        %v1156 = vpop.permute.xlu0 %1155
        %1157 = vrot.lane.b32.xlu0 %v1140, 56
        %v1158 = vpop.permute.xlu0 %1157
        %v1159 = vrot.slane %v1148, 4
        %v1160 = vrot.slane %v1150, 4
        %v1161 = vrot.slane %v1152, 4
        %v1162 = vrot.slane %v1154, 4
        %v1163 = vrot.slane %v1156, 4
        %v1164 = vrot.slane %v1158, 4
        %v1165 = vsel %vm365, %v1159, %v1160
        %vm1166 = vcmask 457728
        %v1167 = vsel %vm1166, %v1148, %v1165
        %v1168 = vsel %vm365, %v1160, %v1161
        %v1169 = vsel %vm1166, %v1150, %v1168
        %v1170 = vsel %vm365, %v1162, %v1163
        %v1171 = vsel %vm1166, %v1154, %v1170
        %v1172 = vsel %vm365, %v1163, %v1164
        %v1173 = vsel %vm1166, %v1156, %v1172
        %1178 = vst [vmem:[#allocation3 + $0x240] sm:$0xff] %v1167
        %1179 = vst [vmem:[#allocation3 + $0x248] sm:$0xff] %v1169
        %1180 = vst [vmem:[#allocation3 + $0x250] sm:$0xff] %v1171
        %1181 = vst [vmem:[#allocation3 + $0x258] sm:$0xff] %v1173
        %v1182 = vld [vmem:[#allocation2 + $0x4] sm:$0xff]
        %v1183 = vld [vmem:[#allocation2 + $0xc] sm:$0xff]
        %v1184 = vld [vmem:[#allocation2 + $0x14] sm:$0xf]
        %v1185 = vld [vmem:[#allocation2 + $0x1c] sm:$0xff]
        %v1186 = vld [vmem:[#allocation2 + $0x24] sm:$0xff]
        %v1187 = vld [vmem:[#allocation2 + $0x2c] sm:$0xf]
        %1194 = vrot.lane.b32.xlu0 %v1182, 55
        %v1195 = vpop.permute.xlu0 %1194
        %1196 = vrot.lane.b32.xlu0 %v1183, 55
        %v1197 = vpop.permute.xlu0 %1196
        %1198 = vrot.lane.b32.xlu0 %v1184, 55
        %v1199 = vpop.permute.xlu0 %1198
        %1200 = vrot.lane.b32.xlu0 %v1185, 55
        %v1201 = vpop.permute.xlu0 %1200
        %1202 = vrot.lane.b32.xlu0 %v1186, 55
        %v1203 = vpop.permute.xlu0 %1202
        %1204 = vrot.lane.b32.xlu0 %v1187, 55
        %v1205 = vpop.permute.xlu0 %1204
        %v1206 = vrot.slane %v1195, 4
        %v1207 = vrot.slane %v1197, 4
        %v1208 = vrot.slane %v1199, 4
        %v1209 = vrot.slane %v1201, 4
        %v1210 = vrot.slane %v1203, 4
        %v1211 = vrot.slane %v1205, 4
        %v1212 = vsel %vm365, %v1206, %v1207
        %vm1213 = vcmask 449536
        %v1214 = vsel %vm1213, %v1195, %v1212
        %v1215 = vsel %vm365, %v1207, %v1208
        %v1216 = vsel %vm1213, %v1197, %v1215
        %v1217 = vsel %vm365, %v1209, %v1210
        %v1218 = vsel %vm1213, %v1201, %v1217
        %v1219 = vsel %vm365, %v1210, %v1211
        %v1220 = vsel %vm1213, %v1203, %v1219
        %1225 = vst [vmem:[#allocation3 + $0x260] sm:$0xff] %v1214
        %1226 = vst [vmem:[#allocation3 + $0x268] sm:$0xff] %v1216
        %1227 = vst [vmem:[#allocation3 + $0x270] sm:$0xff] %v1218
        %1228 = vst [vmem:[#allocation3 + $0x278] sm:$0xff] %v1220
        %v1229 = vld [vmem:[#allocation2 + $0x4] sm:$0xff]
        %v1230 = vld [vmem:[#allocation2 + $0xc] sm:$0xff]
        %v1231 = vld [vmem:[#allocation2 + $0x14] sm:$0xf]
        %v1232 = vld [vmem:[#allocation2 + $0x1c] sm:$0xff]
        %v1233 = vld [vmem:[#allocation2 + $0x24] sm:$0xff]
        %v1234 = vld [vmem:[#allocation2 + $0x2c] sm:$0xf]
        %1241 = vrot.lane.b32.xlu0 %v1229, 54
        %v1242 = vpop.permute.xlu0 %1241
        %1243 = vrot.lane.b32.xlu0 %v1230, 54
        %v1244 = vpop.permute.xlu0 %1243
        %1245 = vrot.lane.b32.xlu0 %v1231, 54
        %v1246 = vpop.permute.xlu0 %1245
        %1247 = vrot.lane.b32.xlu0 %v1232, 54
        %v1248 = vpop.permute.xlu0 %1247
        %1249 = vrot.lane.b32.xlu0 %v1233, 54
        %v1250 = vpop.permute.xlu0 %1249
        %1251 = vrot.lane.b32.xlu0 %v1234, 54
        %v1252 = vpop.permute.xlu0 %1251
        %v1253 = vrot.slane %v1242, 4
        %v1254 = vrot.slane %v1244, 4
        %v1255 = vrot.slane %v1246, 4
        %v1256 = vrot.slane %v1248, 4
        %v1257 = vrot.slane %v1250, 4
        %v1258 = vrot.slane %v1252, 4
        %v1259 = vsel %vm365, %v1253, %v1254
        %vm1260 = vcmask 441344
        %v1261 = vsel %vm1260, %v1242, %v1259
        %v1262 = vsel %vm365, %v1254, %v1255
        %v1263 = vsel %vm1260, %v1244, %v1262
        %v1264 = vsel %vm365, %v1256, %v1257
        %v1265 = vsel %vm1260, %v1248, %v1264
        %v1266 = vsel %vm365, %v1257, %v1258
        %v1267 = vsel %vm1260, %v1250, %v1266
        %1272 = vst [vmem:[#allocation3 + $0x280] sm:$0xff] %v1261
        %1273 = vst [vmem:[#allocation3 + $0x288] sm:$0xff] %v1263
        %1274 = vst [vmem:[#allocation3 + $0x290] sm:$0xff] %v1265
        %1275 = vst [vmem:[#allocation3 + $0x298] sm:$0xff] %v1267
        %v1276 = vld [vmem:[#allocation2 + $0x4] sm:$0xff]
        %v1277 = vld [vmem:[#allocation2 + $0xc] sm:$0xff]
        %v1278 = vld [vmem:[#allocation2 + $0x14] sm:$0xf]
        %v1279 = vld [vmem:[#allocation2 + $0x1c] sm:$0xff]
        %v1280 = vld [vmem:[#allocation2 + $0x24] sm:$0xff]
        %v1281 = vld [vmem:[#allocation2 + $0x2c] sm:$0xf]
        %1288 = vrot.lane.b32.xlu0 %v1276, 46
        %v1289 = vpop.permute.xlu0 %1288
        %1290 = vrot.lane.b32.xlu0 %v1277, 46
        %v1291 = vpop.permute.xlu0 %1290
        %1292 = vrot.lane.b32.xlu0 %v1278, 46
        %v1293 = vpop.permute.xlu0 %1292
        %1294 = vrot.lane.b32.xlu0 %v1279, 46
        %v1295 = vpop.permute.xlu0 %1294
        %1296 = vrot.lane.b32.xlu0 %v1280, 46
        %v1297 = vpop.permute.xlu0 %1296
        %1298 = vrot.lane.b32.xlu0 %v1281, 46
        %v1299 = vpop.permute.xlu0 %1298
        %v1300 = vrot.slane %v1289, 4
        %v1301 = vrot.slane %v1291, 4
        %v1302 = vrot.slane %v1293, 4
        %v1303 = vrot.slane %v1295, 4
        %v1304 = vrot.slane %v1297, 4
        %v1305 = vrot.slane %v1299, 4
        %v1306 = vsel %vm365, %v1300, %v1301
        %vm1307 = vcmask 375808
        %v1308 = vsel %vm1307, %v1289, %v1306
        %v1309 = vsel %vm365, %v1301, %v1302
        %v1310 = vsel %vm1307, %v1291, %v1309
        %v1311 = vsel %vm365, %v1303, %v1304
        %v1312 = vsel %vm1307, %v1295, %v1311
        %v1313 = vsel %vm365, %v1304, %v1305
        %v1314 = vsel %vm1307, %v1297, %v1313
        %1319 = vst [vmem:[#allocation3 + $0x2a0] sm:$0xff] %v1308
        %1320 = vst [vmem:[#allocation3 + $0x2a8] sm:$0xff] %v1310
        %1321 = vst [vmem:[#allocation3 + $0x2b0] sm:$0xff] %v1312
        %1322 = vst [vmem:[#allocation3 + $0x2b8] sm:$0xff] %v1314
        %v1323 = vld [vmem:[#allocation2 + $0x4] sm:$0xff]
        %v1324 = vld [vmem:[#allocation2 + $0xc] sm:$0xff]
        %v1325 = vld [vmem:[#allocation2 + $0x14] sm:$0xf]
        %v1326 = vld [vmem:[#allocation2 + $0x1c] sm:$0xff]
        %v1327 = vld [vmem:[#allocation2 + $0x24] sm:$0xff]
        %v1328 = vld [vmem:[#allocation2 + $0x2c] sm:$0xf]
        %1335 = vrot.lane.b32.xlu0 %v1323, 45
        %v1336 = vpop.permute.xlu0 %1335
        %1337 = vrot.lane.b32.xlu0 %v1324, 45
        %v1338 = vpop.permute.xlu0 %1337
        %1339 = vrot.lane.b32.xlu0 %v1325, 45
        %v1340 = vpop.permute.xlu0 %1339
        %1341 = vrot.lane.b32.xlu0 %v1326, 45
        %v1342 = vpop.permute.xlu0 %1341
        %1343 = vrot.lane.b32.xlu0 %v1327, 45
        %v1344 = vpop.permute.xlu0 %1343
        %1345 = vrot.lane.b32.xlu0 %v1328, 45
        %v1346 = vpop.permute.xlu0 %1345
        %v1347 = vrot.slane %v1336, 4
        %v1348 = vrot.slane %v1338, 4
        %v1349 = vrot.slane %v1340, 4
        %v1350 = vrot.slane %v1342, 4
        %v1351 = vrot.slane %v1344, 4
        %v1352 = vrot.slane %v1346, 4
        %v1353 = vsel %vm365, %v1347, %v1348
        %vm1354 = vcmask 367616
        %v1355 = vsel %vm1354, %v1336, %v1353
        %v1356 = vsel %vm365, %v1348, %v1349
        %v1357 = vsel %vm1354, %v1338, %v1356
        %v1358 = vsel %vm365, %v1350, %v1351
        %v1359 = vsel %vm1354, %v1342, %v1358
        %v1360 = vsel %vm365, %v1351, %v1352
        %v1361 = vsel %vm1354, %v1344, %v1360
        %1366 = vst [vmem:[#allocation3 + $0x2c0] sm:$0xff] %v1355
        %1367 = vst [vmem:[#allocation3 + $0x2c8] sm:$0xff] %v1357
        %1368 = vst [vmem:[#allocation3 + $0x2d0] sm:$0xff] %v1359
        %1369 = vst [vmem:[#allocation3 + $0x2d8] sm:$0xff] %v1361
        %v1370 = vld [vmem:[#allocation2 + $0x4] sm:$0xff]
        %v1371 = vld [vmem:[#allocation2 + $0xc] sm:$0xff]
        %v1372 = vld [vmem:[#allocation2 + $0x14] sm:$0xf]
        %v1373 = vld [vmem:[#allocation2 + $0x1c] sm:$0xff]
        %v1374 = vld [vmem:[#allocation2 + $0x24] sm:$0xff]
        %v1375 = vld [vmem:[#allocation2 + $0x2c] sm:$0xf]
        %1382 = vrot.lane.b32.xlu0 %v1370, 44
        %v1383 = vpop.permute.xlu0 %1382
        %1384 = vrot.lane.b32.xlu0 %v1371, 44
        %v1385 = vpop.permute.xlu0 %1384
        %1386 = vrot.lane.b32.xlu0 %v1372, 44
        %v1387 = vpop.permute.xlu0 %1386
        %1388 = vrot.lane.b32.xlu0 %v1373, 44
        %v1389 = vpop.permute.xlu0 %1388
        %1390 = vrot.lane.b32.xlu0 %v1374, 44
        %v1391 = vpop.permute.xlu0 %1390
        %1392 = vrot.lane.b32.xlu0 %v1375, 44
        %v1393 = vpop.permute.xlu0 %1392
        %v1394 = vrot.slane %v1383, 4
        %v1395 = vrot.slane %v1385, 4
        %v1396 = vrot.slane %v1387, 4
        %v1397 = vrot.slane %v1389, 4
        %v1398 = vrot.slane %v1391, 4
        %v1399 = vrot.slane %v1393, 4
        %v1400 = vsel %vm365, %v1394, %v1395
        %vm1401 = vcmask 359424
        %v1402 = vsel %vm1401, %v1383, %v1400
        %v1403 = vsel %vm365, %v1395, %v1396
        %v1404 = vsel %vm1401, %v1385, %v1403
        %v1405 = vsel %vm365, %v1397, %v1398
        %v1406 = vsel %vm1401, %v1389, %v1405
        %v1407 = vsel %vm365, %v1398, %v1399
        %v1408 = vsel %vm1401, %v1391, %v1407
        %1413 = vst [vmem:[#allocation3 + $0x2e0] sm:$0xff] %v1402
        %1414 = vst [vmem:[#allocation3 + $0x2e8] sm:$0xff] %v1404
        %1415 = vst [vmem:[#allocation3 + $0x2f0] sm:$0xff] %v1406
        %1416 = vst [vmem:[#allocation3 + $0x2f8] sm:$0xff] %v1408
        %v1417 = vld [vmem:[#allocation2 + $0x4] sm:$0xff]
        %v1418 = vld [vmem:[#allocation2 + $0xc] sm:$0xff]
        %v1419 = vld [vmem:[#allocation2 + $0x14] sm:$0xf]
        %v1420 = vld [vmem:[#allocation2 + $0x1c] sm:$0xff]
        %v1421 = vld [vmem:[#allocation2 + $0x24] sm:$0xff]
        %v1422 = vld [vmem:[#allocation2 + $0x2c] sm:$0xf]
        %1429 = vrot.lane.b32.xlu0 %v1417, 36
        %v1430 = vpop.permute.xlu0 %1429
        %1431 = vrot.lane.b32.xlu0 %v1418, 36
        %v1432 = vpop.permute.xlu0 %1431
        %1433 = vrot.lane.b32.xlu0 %v1419, 36
        %v1434 = vpop.permute.xlu0 %1433
        %1435 = vrot.lane.b32.xlu0 %v1420, 36
        %v1436 = vpop.permute.xlu0 %1435
        %1437 = vrot.lane.b32.xlu0 %v1421, 36
        %v1438 = vpop.permute.xlu0 %1437
        %1439 = vrot.lane.b32.xlu0 %v1422, 36
        %v1440 = vpop.permute.xlu0 %1439
        %v1441 = vrot.slane %v1430, 4
        %v1442 = vrot.slane %v1432, 4
        %v1443 = vrot.slane %v1434, 4
        %v1444 = vrot.slane %v1436, 4
        %v1445 = vrot.slane %v1438, 4
        %v1446 = vrot.slane %v1440, 4
        %v1447 = vsel %vm365, %v1441, %v1442
        %vm1448 = vcmask 293888
        %v1449 = vsel %vm1448, %v1430, %v1447
        %v1450 = vsel %vm365, %v1442, %v1443
        %v1451 = vsel %vm1448, %v1432, %v1450
        %v1452 = vsel %vm365, %v1444, %v1445
        %v1453 = vsel %vm1448, %v1436, %v1452
        %v1454 = vsel %vm365, %v1445, %v1446
        %v1455 = vsel %vm1448, %v1438, %v1454
        %1460 = vst [vmem:[#allocation3 + $0x300] sm:$0xff] %v1449
        %1461 = vst [vmem:[#allocation3 + $0x308] sm:$0xff] %v1451
        %1462 = vst [vmem:[#allocation3 + $0x310] sm:$0xff] %v1453
        %1463 = vst [vmem:[#allocation3 + $0x318] sm:$0xff] %v1455
        %v1464 = vld [vmem:[#allocation2 + $0x4] sm:$0xff]
        %v1465 = vld [vmem:[#allocation2 + $0xc] sm:$0xff]
        %v1466 = vld [vmem:[#allocation2 + $0x14] sm:$0xf]
        %v1467 = vld [vmem:[#allocation2 + $0x1c] sm:$0xff]
        %v1468 = vld [vmem:[#allocation2 + $0x24] sm:$0xff]
        %v1469 = vld [vmem:[#allocation2 + $0x2c] sm:$0xf]
        %1476 = vrot.lane.b32.xlu0 %v1464, 35
        %v1477 = vpop.permute.xlu0 %1476
        %1478 = vrot.lane.b32.xlu0 %v1465, 35
        %v1479 = vpop.permute.xlu0 %1478
        %1480 = vrot.lane.b32.xlu0 %v1466, 35
        %v1481 = vpop.permute.xlu0 %1480
        %1482 = vrot.lane.b32.xlu0 %v1467, 35
        %v1483 = vpop.permute.xlu0 %1482
        %1484 = vrot.lane.b32.xlu0 %v1468, 35
        %v1485 = vpop.permute.xlu0 %1484
        %1486 = vrot.lane.b32.xlu0 %v1469, 35
        %v1487 = vpop.permute.xlu0 %1486
        %v1488 = vrot.slane %v1477, 4
        %v1489 = vrot.slane %v1479, 4
        %v1490 = vrot.slane %v1481, 4
        %v1491 = vrot.slane %v1483, 4
        %v1492 = vrot.slane %v1485, 4
        %v1493 = vrot.slane %v1487, 4
        %v1494 = vsel %vm365, %v1488, %v1489
        %vm1495 = vcmask 285696
        %v1496 = vsel %vm1495, %v1477, %v1494
        %v1497 = vsel %vm365, %v1489, %v1490
        %v1498 = vsel %vm1495, %v1479, %v1497
        %v1499 = vsel %vm365, %v1491, %v1492
        %v1500 = vsel %vm1495, %v1483, %v1499
        %v1501 = vsel %vm365, %v1492, %v1493
        %v1502 = vsel %vm1495, %v1485, %v1501
        %1507 = vst [vmem:[#allocation3 + $0x320] sm:$0xff] %v1496
        %1508 = vst [vmem:[#allocation3 + $0x328] sm:$0xff] %v1498
        %1509 = vst [vmem:[#allocation3 + $0x330] sm:$0xff] %v1500
        %1510 = vst [vmem:[#allocation3 + $0x338] sm:$0xff] %v1502
        %v1511 = vld [vmem:[#allocation2 + $0x4] sm:$0xff]
        %v1512 = vld [vmem:[#allocation2 + $0xc] sm:$0xff]
        %v1513 = vld [vmem:[#allocation2 + $0x14] sm:$0xf]
        %v1514 = vld [vmem:[#allocation2 + $0x1c] sm:$0xff]
        %v1515 = vld [vmem:[#allocation2 + $0x24] sm:$0xff]
        %v1516 = vld [vmem:[#allocation2 + $0x2c] sm:$0xf]
        %1523 = vrot.lane.b32.xlu0 %v1511, 34
        %v1524 = vpop.permute.xlu0 %1523
        %1525 = vrot.lane.b32.xlu0 %v1512, 34
        %v1526 = vpop.permute.xlu0 %1525
        %1527 = vrot.lane.b32.xlu0 %v1513, 34
        %v1528 = vpop.permute.xlu0 %1527
        %1529 = vrot.lane.b32.xlu0 %v1514, 34
        %v1530 = vpop.permute.xlu0 %1529
        %1531 = vrot.lane.b32.xlu0 %v1515, 34
        %v1532 = vpop.permute.xlu0 %1531
        %1533 = vrot.lane.b32.xlu0 %v1516, 34
        %v1534 = vpop.permute.xlu0 %1533
        %v1535 = vrot.slane %v1524, 4
        %v1536 = vrot.slane %v1526, 4
        %v1537 = vrot.slane %v1528, 4
        %v1538 = vrot.slane %v1530, 4
        %v1539 = vrot.slane %v1532, 4
        %v1540 = vrot.slane %v1534, 4
        %v1541 = vsel %vm365, %v1535, %v1536
        %vm1542 = vcmask 277504
        %v1543 = vsel %vm1542, %v1524, %v1541
        %v1544 = vsel %vm365, %v1536, %v1537
        %v1545 = vsel %vm1542, %v1526, %v1544
        %v1546 = vsel %vm365, %v1538, %v1539
        %v1547 = vsel %vm1542, %v1530, %v1546
        %v1548 = vsel %vm365, %v1539, %v1540
        %v1549 = vsel %vm1542, %v1532, %v1548
        %1554 = vst [vmem:[#allocation3 + $0x340] sm:$0xff] %v1543
        %1555 = vst [vmem:[#allocation3 + $0x348] sm:$0xff] %v1545
        %1556 = vst [vmem:[#allocation3 + $0x350] sm:$0xff] %v1547
        %1557 = vst [vmem:[#allocation3 + $0x358] sm:$0xff] %v1549
        %v1558 = vld [vmem:[#allocation7] sm:$0xff]
        %v1559 = vld [vmem:[#allocation7 + $0x8] sm:$0xff]
        %v1560 = vld [vmem:[#allocation3] sm:$0xff]
        %v1561 = vld [vmem:[#allocation3 + $0x8] sm:$0xff]
        %v1562 = vld [vmem:[#allocation3 + $0x10] sm:$0xff]
        %v1563 = vld [vmem:[#allocation3 + $0x18] sm:$0xff]
        %v1564 = vld [vmem:[#allocation3 + $0x20] sm:$0xff]
        %v1565 = vld [vmem:[#allocation3 + $0x28] sm:$0xff]
        %v1566 = vld [vmem:[#allocation3 + $0x30] sm:$0xff]
        %v1567 = vld [vmem:[#allocation3 + $0x38] sm:$0xff]
        %v1568 = vld [vmem:[#allocation3 + $0x40] sm:$0xff]
        %v1569 = vld [vmem:[#allocation3 + $0x48] sm:$0xff]
        %v1570 = vld [vmem:[#allocation3 + $0x50] sm:$0xff]
        %v1571 = vld [vmem:[#allocation3 + $0x58] sm:$0xff]
        %v1572 = vld [vmem:[#allocation3 + $0x60] sm:$0xff]
        %v1573 = vld [vmem:[#allocation3 + $0x68] sm:$0xff]
        %v1574 = vld [vmem:[#allocation3 + $0x70] sm:$0xff]
        %v1575 = vld [vmem:[#allocation3 + $0x78] sm:$0xff]
        %v1576 = vld [vmem:[#allocation3 + $0x80] sm:$0xff]
        %v1577 = vld [vmem:[#allocation3 + $0x88] sm:$0xff]
        %v1578 = vld [vmem:[#allocation3 + $0x90] sm:$0xff]
        %v1579 = vld [vmem:[#allocation3 + $0x98] sm:$0xff]
        %v1580 = vld [vmem:[#allocation3 + $0xa0] sm:$0xff]
        %v1581 = vld [vmem:[#allocation3 + $0xa8] sm:$0xff]
        %v1582 = vld [vmem:[#allocation3 + $0xb0] sm:$0xff]
        %v1583 = vld [vmem:[#allocation3 + $0xb8] sm:$0xff]
        %v1584 = vld [vmem:[#allocation3 + $0xc0] sm:$0xff]
        %v1585 = vld [vmem:[#allocation3 + $0xc8] sm:$0xff]
        %v1586 = vld [vmem:[#allocation3 + $0xd0] sm:$0xff]
        %v1587 = vld [vmem:[#allocation3 + $0xd8] sm:$0xff]
        %v1588 = vld [vmem:[#allocation3 + $0xe0] sm:$0xff]
        %v1589 = vld [vmem:[#allocation3 + $0xe8] sm:$0xff]
        %v1590 = vld [vmem:[#allocation3 + $0xf0] sm:$0xff]
        %v1591 = vld [vmem:[#allocation3 + $0xf8] sm:$0xff]
        %v1592 = vld [vmem:[#allocation3 + $0x100] sm:$0xff]
        %v1593 = vld [vmem:[#allocation3 + $0x108] sm:$0xff]
        %v1594 = vld [vmem:[#allocation3 + $0x110] sm:$0xff]
        %v1595 = vld [vmem:[#allocation3 + $0x118] sm:$0xff]
        %v1596 = vld [vmem:[#allocation3 + $0x120] sm:$0xff]
        %v1597 = vld [vmem:[#allocation3 + $0x128] sm:$0xff]
        %v1598 = vld [vmem:[#allocation3 + $0x130] sm:$0xff]
        %v1599 = vld [vmem:[#allocation3 + $0x138] sm:$0xff]
        %v1600 = vld [vmem:[#allocation3 + $0x140] sm:$0xff]
        %v1601 = vld [vmem:[#allocation3 + $0x148] sm:$0xff]
        %v1602 = vld [vmem:[#allocation3 + $0x150] sm:$0xff]
        %v1603 = vld [vmem:[#allocation3 + $0x158] sm:$0xff]
        %v1604 = vld [vmem:[#allocation3 + $0x160] sm:$0xff]
        %v1605 = vld [vmem:[#allocation3 + $0x168] sm:$0xff]
        %v1606 = vld [vmem:[#allocation3 + $0x170] sm:$0xff]
        %v1607 = vld [vmem:[#allocation3 + $0x178] sm:$0xff]
        %v1608 = vld [vmem:[#allocation3 + $0x180] sm:$0xff]
        %v1609 = vld [vmem:[#allocation3 + $0x188] sm:$0xff]
        %v1610 = vld [vmem:[#allocation3 + $0x190] sm:$0xff]
        %v1611 = vld [vmem:[#allocation3 + $0x198] sm:$0xff]
        %v1612 = vld [vmem:[#allocation3 + $0x1a0] sm:$0xff]
        %v1613 = vld [vmem:[#allocation3 + $0x1a8] sm:$0xff]
        %v1614 = vld [vmem:[#allocation3 + $0x1b0] sm:$0xff]
        %v1615 = vld [vmem:[#allocation3 + $0x1b8] sm:$0xff]
        %v1616 = vld [vmem:[#allocation3 + $0x1c0] sm:$0xff]
        %v1617 = vld [vmem:[#allocation3 + $0x1c8] sm:$0xff]
        %v1618 = vld [vmem:[#allocation3 + $0x1d0] sm:$0xff]
        %v1619 = vld [vmem:[#allocation3 + $0x1d8] sm:$0xff]
        %v1620 = vld [vmem:[#allocation3 + $0x1e0] sm:$0xff]
        %v1621 = vld [vmem:[#allocation3 + $0x1e8] sm:$0xff]
        %v1622 = vld [vmem:[#allocation3 + $0x1f0] sm:$0xff]
        %v1623 = vld [vmem:[#allocation3 + $0x1f8] sm:$0xff]
        %v1624 = vld [vmem:[#allocation3 + $0x200] sm:$0xff]
        %v1625 = vld [vmem:[#allocation3 + $0x208] sm:$0xff]
        %v1626 = vld [vmem:[#allocation3 + $0x210] sm:$0xff]
        %v1627 = vld [vmem:[#allocation3 + $0x218] sm:$0xff]
        %v1628 = vld [vmem:[#allocation3 + $0x220] sm:$0xff]
        %v1629 = vld [vmem:[#allocation3 + $0x228] sm:$0xff]
        %v1630 = vld [vmem:[#allocation3 + $0x230] sm:$0xff]
        %v1631 = vld [vmem:[#allocation3 + $0x238] sm:$0xff]
        %v1632 = vld [vmem:[#allocation3 + $0x240] sm:$0xff]
        %v1633 = vld [vmem:[#allocation3 + $0x248] sm:$0xff]
        %v1634 = vld [vmem:[#allocation3 + $0x250] sm:$0xff]
        %v1635 = vld [vmem:[#allocation3 + $0x258] sm:$0xff]
        %v1636 = vld [vmem:[#allocation3 + $0x260] sm:$0xff]
        %v1637 = vld [vmem:[#allocation3 + $0x268] sm:$0xff]
        %v1638 = vld [vmem:[#allocation3 + $0x270] sm:$0xff]
        %v1639 = vld [vmem:[#allocation3 + $0x278] sm:$0xff]
        %v1640 = vld [vmem:[#allocation3 + $0x280] sm:$0xff]
        %v1641 = vld [vmem:[#allocation3 + $0x288] sm:$0xff]
        %v1642 = vld [vmem:[#allocation3 + $0x290] sm:$0xff]
        %v1643 = vld [vmem:[#allocation3 + $0x298] sm:$0xff]
        %v1644 = vld [vmem:[#allocation3 + $0x2a0] sm:$0xff]
        %v1645 = vld [vmem:[#allocation3 + $0x2a8] sm:$0xff]
        %v1646 = vld [vmem:[#allocation3 + $0x2b0] sm:$0xff]
        %v1647 = vld [vmem:[#allocation3 + $0x2b8] sm:$0xff]
        %v1648 = vld [vmem:[#allocation3 + $0x2c0] sm:$0xff]
        %v1649 = vld [vmem:[#allocation3 + $0x2c8] sm:$0xff]
        %v1650 = vld [vmem:[#allocation3 + $0x2d0] sm:$0xff]
        %v1651 = vld [vmem:[#allocation3 + $0x2d8] sm:$0xff]
        %v1652 = vld [vmem:[#allocation3 + $0x2e0] sm:$0xff]
        %v1653 = vld [vmem:[#allocation3 + $0x2e8] sm:$0xff]
        %v1654 = vld [vmem:[#allocation3 + $0x2f0] sm:$0xff]
        %v1655 = vld [vmem:[#allocation3 + $0x2f8] sm:$0xff]
        %v1656 = vld [vmem:[#allocation3 + $0x300] sm:$0xff]
        %v1657 = vld [vmem:[#allocation3 + $0x308] sm:$0xff]
        %v1658 = vld [vmem:[#allocation3 + $0x310] sm:$0xff]
        %v1659 = vld [vmem:[#allocation3 + $0x318] sm:$0xff]
        %v1660 = vld [vmem:[#allocation3 + $0x320] sm:$0xff]
        %v1661 = vld [vmem:[#allocation3 + $0x328] sm:$0xff]
        %v1662 = vld [vmem:[#allocation3 + $0x330] sm:$0xff]
        %v1663 = vld [vmem:[#allocation3 + $0x338] sm:$0xff]
        %v1664 = vld [vmem:[#allocation3 + $0x340] sm:$0xff]
        %v1665 = vld [vmem:[#allocation3 + $0x348] sm:$0xff]
        %v1666 = vld [vmem:[#allocation3 + $0x350] sm:$0xff]
        %v1667 = vld [vmem:[#allocation3 + $0x358] sm:$0xff]
        %v1670 = vunpack.c.l.b16 %v1558
        %v1671 = vunpack.c.h.b16 %v1558
        %v1672 = vunpack.c.l.b16 %v1559
        %v1673 = vunpack.c.h.b16 %v1559
        %v1674 = vpack.c.b16 %v1670, %v1670
        %v1675 = vpack.c.b16 %v1671, %v1671
        %v1676 = vpack.c.b16 %v1672, %v1672
        %v1677 = vpack.c.b16 %v1673, %v1673
        %v1789 = vunpack.c.l.b16 %v1560
        %v1790 = vunpack.c.h.b16 %v1560
        %v1791 = vunpack.c.l.b16 %v1561
        %v1792 = vunpack.c.h.b16 %v1561
        %v1793 = vunpack.c.l.b16 %v1562
        %v1794 = vunpack.c.h.b16 %v1562
        %v1795 = vunpack.c.l.b16 %v1563
        %v1796 = vunpack.c.h.b16 %v1563
        %v1797 = vunpack.c.l.b16 %v1564
        %v1798 = vunpack.c.h.b16 %v1564
        %v1799 = vunpack.c.l.b16 %v1565
        %v1800 = vunpack.c.h.b16 %v1565
        %v1801 = vunpack.c.l.b16 %v1566
        %v1802 = vunpack.c.h.b16 %v1566
        %v1803 = vunpack.c.l.b16 %v1567
        %v1804 = vunpack.c.h.b16 %v1567
        %v1805 = vunpack.c.l.b16 %v1568
        %v1806 = vunpack.c.h.b16 %v1568
        %v1807 = vunpack.c.l.b16 %v1569
        %v1808 = vunpack.c.h.b16 %v1569
        %v1809 = vunpack.c.l.b16 %v1570
        %v1810 = vunpack.c.h.b16 %v1570
        %v1811 = vunpack.c.l.b16 %v1571
        %v1812 = vunpack.c.h.b16 %v1571
        %v1813 = vunpack.c.l.b16 %v1572
        %v1814 = vunpack.c.h.b16 %v1572
        %v1815 = vunpack.c.l.b16 %v1573
        %v1816 = vunpack.c.h.b16 %v1573
        %v1817 = vunpack.c.l.b16 %v1574
        %v1818 = vunpack.c.h.b16 %v1574
        %v1819 = vunpack.c.l.b16 %v1575
        %v1820 = vunpack.c.h.b16 %v1575
        %v1821 = vunpack.c.l.b16 %v1576
        %v1822 = vunpack.c.h.b16 %v1576
        %v1823 = vunpack.c.l.b16 %v1577
        %v1824 = vunpack.c.h.b16 %v1577
        %v1825 = vunpack.c.l.b16 %v1578
        %v1826 = vunpack.c.h.b16 %v1578
        %v1827 = vunpack.c.l.b16 %v1579
        %v1828 = vunpack.c.h.b16 %v1579
        %v1829 = vunpack.c.l.b16 %v1580
        %v1830 = vunpack.c.h.b16 %v1580
        %v1831 = vunpack.c.l.b16 %v1581
        %v1832 = vunpack.c.h.b16 %v1581
        %v1833 = vunpack.c.l.b16 %v1582
        %v1834 = vunpack.c.h.b16 %v1582
        %v1835 = vunpack.c.l.b16 %v1583
        %v1836 = vunpack.c.h.b16 %v1583
        %v1837 = vunpack.c.l.b16 %v1584
        %v1838 = vunpack.c.h.b16 %v1584
        %v1839 = vunpack.c.l.b16 %v1585
        %v1840 = vunpack.c.h.b16 %v1585
        %v1841 = vunpack.c.l.b16 %v1586
        %v1842 = vunpack.c.h.b16 %v1586
        %v1843 = vunpack.c.l.b16 %v1587
        %v1844 = vunpack.c.h.b16 %v1587
        %v1845 = vunpack.c.l.b16 %v1588
        %v1846 = vunpack.c.h.b16 %v1588
        %v1847 = vunpack.c.l.b16 %v1589
        %v1848 = vunpack.c.h.b16 %v1589
        %v1849 = vunpack.c.l.b16 %v1590
        %v1850 = vunpack.c.h.b16 %v1590
        %v1851 = vunpack.c.l.b16 %v1591
        %v1852 = vunpack.c.h.b16 %v1591
        %v1853 = vunpack.c.l.b16 %v1592
        %v1854 = vunpack.c.h.b16 %v1592
        %v1855 = vunpack.c.l.b16 %v1593
        %v1856 = vunpack.c.h.b16 %v1593
        %v1857 = vunpack.c.l.b16 %v1594
        %v1858 = vunpack.c.h.b16 %v1594
        %v1859 = vunpack.c.l.b16 %v1595
        %v1860 = vunpack.c.h.b16 %v1595
        %v1861 = vunpack.c.l.b16 %v1596
        %v1862 = vunpack.c.h.b16 %v1596
        %v1863 = vunpack.c.l.b16 %v1597
        %v1864 = vunpack.c.h.b16 %v1597
        %v1865 = vunpack.c.l.b16 %v1598
        %v1866 = vunpack.c.h.b16 %v1598
        %v1867 = vunpack.c.l.b16 %v1599
        %v1868 = vunpack.c.h.b16 %v1599
        %v1869 = vunpack.c.l.b16 %v1600
        %v1870 = vunpack.c.h.b16 %v1600
        %v1871 = vunpack.c.l.b16 %v1601
        %v1872 = vunpack.c.h.b16 %v1601
        %v1873 = vunpack.c.l.b16 %v1602
        %v1874 = vunpack.c.h.b16 %v1602
        %v1875 = vunpack.c.l.b16 %v1603
        %v1876 = vunpack.c.h.b16 %v1603
        %v1877 = vunpack.c.l.b16 %v1604
        %v1878 = vunpack.c.h.b16 %v1604
        %v1879 = vunpack.c.l.b16 %v1605
        %v1880 = vunpack.c.h.b16 %v1605
        %v1881 = vunpack.c.l.b16 %v1606
        %v1882 = vunpack.c.h.b16 %v1606
        %v1883 = vunpack.c.l.b16 %v1607
        %v1884 = vunpack.c.h.b16 %v1607
        %v1885 = vunpack.c.l.b16 %v1608
        %v1886 = vunpack.c.h.b16 %v1608
        %v1887 = vunpack.c.l.b16 %v1609
        %v1888 = vunpack.c.h.b16 %v1609
        %v1889 = vunpack.c.l.b16 %v1610
        %v1890 = vunpack.c.h.b16 %v1610
        %v1891 = vunpack.c.l.b16 %v1611
        %v1892 = vunpack.c.h.b16 %v1611
        %v1893 = vunpack.c.l.b16 %v1612
        %v1894 = vunpack.c.h.b16 %v1612
        %v1895 = vunpack.c.l.b16 %v1613
        %v1896 = vunpack.c.h.b16 %v1613
        %v1897 = vunpack.c.l.b16 %v1614
        %v1898 = vunpack.c.h.b16 %v1614
        %v1899 = vunpack.c.l.b16 %v1615
        %v1900 = vunpack.c.h.b16 %v1615
        %v1901 = vunpack.c.l.b16 %v1616
        %v1902 = vunpack.c.h.b16 %v1616
        %v1903 = vunpack.c.l.b16 %v1617
        %v1904 = vunpack.c.h.b16 %v1617
        %v1905 = vunpack.c.l.b16 %v1618
        %v1906 = vunpack.c.h.b16 %v1618
        %v1907 = vunpack.c.l.b16 %v1619
        %v1908 = vunpack.c.h.b16 %v1619
        %v1909 = vunpack.c.l.b16 %v1620
        %v1910 = vunpack.c.h.b16 %v1620
        %v1911 = vunpack.c.l.b16 %v1621
        %v1912 = vunpack.c.h.b16 %v1621
        %v1913 = vunpack.c.l.b16 %v1622
        %v1914 = vunpack.c.h.b16 %v1622
        %v1915 = vunpack.c.l.b16 %v1623
        %v1916 = vunpack.c.h.b16 %v1623
        %v1917 = vunpack.c.l.b16 %v1624
        %v1918 = vunpack.c.h.b16 %v1624
        %v1919 = vunpack.c.l.b16 %v1625
        %v1920 = vunpack.c.h.b16 %v1625
        %v1921 = vunpack.c.l.b16 %v1626
        %v1922 = vunpack.c.h.b16 %v1626
        %v1923 = vunpack.c.l.b16 %v1627
        %v1924 = vunpack.c.h.b16 %v1627
        %v1925 = vunpack.c.l.b16 %v1628
        %v1926 = vunpack.c.h.b16 %v1628
        %v1927 = vunpack.c.l.b16 %v1629
        %v1928 = vunpack.c.h.b16 %v1629
        %v1929 = vunpack.c.l.b16 %v1630
        %v1930 = vunpack.c.h.b16 %v1630
        %v1931 = vunpack.c.l.b16 %v1631
        %v1932 = vunpack.c.h.b16 %v1631
        %v1933 = vunpack.c.l.b16 %v1632
        %v1934 = vunpack.c.h.b16 %v1632
        %v1935 = vunpack.c.l.b16 %v1633
        %v1936 = vunpack.c.h.b16 %v1633
        %v1937 = vunpack.c.l.b16 %v1634
        %v1938 = vunpack.c.h.b16 %v1634
        %v1939 = vunpack.c.l.b16 %v1635
        %v1940 = vunpack.c.h.b16 %v1635
        %v1941 = vunpack.c.l.b16 %v1636
        %v1942 = vunpack.c.h.b16 %v1636
        %v1943 = vunpack.c.l.b16 %v1637
        %v1944 = vunpack.c.h.b16 %v1637
        %v1945 = vunpack.c.l.b16 %v1638
        %v1946 = vunpack.c.h.b16 %v1638
        %v1947 = vunpack.c.l.b16 %v1639
        %v1948 = vunpack.c.h.b16 %v1639
        %v1949 = vunpack.c.l.b16 %v1640
        %v1950 = vunpack.c.h.b16 %v1640
        %v1951 = vunpack.c.l.b16 %v1641
        %v1952 = vunpack.c.h.b16 %v1641
        %v1953 = vunpack.c.l.b16 %v1642
        %v1954 = vunpack.c.h.b16 %v1642
        %v1955 = vunpack.c.l.b16 %v1643
        %v1956 = vunpack.c.h.b16 %v1643
        %v1957 = vunpack.c.l.b16 %v1644
        %v1958 = vunpack.c.h.b16 %v1644
        %v1959 = vunpack.c.l.b16 %v1645
        %v1960 = vunpack.c.h.b16 %v1645
        %v1961 = vunpack.c.l.b16 %v1646
        %v1962 = vunpack.c.h.b16 %v1646
        %v1963 = vunpack.c.l.b16 %v1647
        %v1964 = vunpack.c.h.b16 %v1647
        %v1965 = vunpack.c.l.b16 %v1648
        %v1966 = vunpack.c.h.b16 %v1648
        %v1967 = vunpack.c.l.b16 %v1649
        %v1968 = vunpack.c.h.b16 %v1649
        %v1969 = vunpack.c.l.b16 %v1650
        %v1970 = vunpack.c.h.b16 %v1650
        %v1971 = vunpack.c.l.b16 %v1651
        %v1972 = vunpack.c.h.b16 %v1651
        %v1973 = vunpack.c.l.b16 %v1652
        %v1974 = vunpack.c.h.b16 %v1652
        %v1975 = vunpack.c.l.b16 %v1653
        %v1976 = vunpack.c.h.b16 %v1653
        %v1977 = vunpack.c.l.b16 %v1654
        %v1978 = vunpack.c.h.b16 %v1654
        %v1979 = vunpack.c.l.b16 %v1655
        %v1980 = vunpack.c.h.b16 %v1655
        %v1981 = vunpack.c.l.b16 %v1656
        %v1982 = vunpack.c.h.b16 %v1656
        %v1983 = vunpack.c.l.b16 %v1657
        %v1984 = vunpack.c.h.b16 %v1657
        %v1985 = vunpack.c.l.b16 %v1658
        %v1986 = vunpack.c.h.b16 %v1658
        %v1987 = vunpack.c.l.b16 %v1659
        %v1988 = vunpack.c.h.b16 %v1659
        %v1989 = vunpack.c.l.b16 %v1660
        %v1990 = vunpack.c.h.b16 %v1660
        %v1991 = vunpack.c.l.b16 %v1661
        %v1992 = vunpack.c.h.b16 %v1661
        %v1993 = vunpack.c.l.b16 %v1662
        %v1994 = vunpack.c.h.b16 %v1662
        %v1995 = vunpack.c.l.b16 %v1663
        %v1996 = vunpack.c.h.b16 %v1663
        %v1997 = vunpack.c.l.b16 %v1664
        %v1998 = vunpack.c.h.b16 %v1664
        %v1999 = vunpack.c.l.b16 %v1665
        %v2000 = vunpack.c.h.b16 %v1665
        %v2001 = vunpack.c.l.b16 %v1666
        %v2002 = vunpack.c.h.b16 %v1666
        %v2003 = vunpack.c.l.b16 %v1667
        %v2004 = vunpack.c.h.b16 %v1667
        %v2005 = vpack.c.b16 %v1793, %v1789
        %v2006 = vpack.c.b16 %v1794, %v1790
        %v2007 = vpack.c.b16 %v1795, %v1791
        %v2008 = vpack.c.b16 %v1796, %v1792
        %v2009 = vpack.c.b16 %v1801, %v1797
        %v2010 = vpack.c.b16 %v1802, %v1798
        %v2011 = vpack.c.b16 %v1803, %v1799
        %v2012 = vpack.c.b16 %v1804, %v1800
        %v2013 = vpack.c.b16 %v1809, %v1805
        %v2014 = vpack.c.b16 %v1810, %v1806
        %v2015 = vpack.c.b16 %v1811, %v1807
        %v2016 = vpack.c.b16 %v1812, %v1808
        %v2017 = vpack.c.b16 %v1817, %v1813
        %v2018 = vpack.c.b16 %v1818, %v1814
        %v2019 = vpack.c.b16 %v1819, %v1815
        %v2020 = vpack.c.b16 %v1820, %v1816
        %v2021 = vpack.c.b16 %v1825, %v1821
        %v2022 = vpack.c.b16 %v1826, %v1822
        %v2023 = vpack.c.b16 %v1827, %v1823
        %v2024 = vpack.c.b16 %v1828, %v1824
        %v2025 = vpack.c.b16 %v1833, %v1829
        %v2026 = vpack.c.b16 %v1834, %v1830
        %v2027 = vpack.c.b16 %v1835, %v1831
        %v2028 = vpack.c.b16 %v1836, %v1832
        %v2029 = vpack.c.b16 %v1841, %v1837
        %v2030 = vpack.c.b16 %v1842, %v1838
        %v2031 = vpack.c.b16 %v1843, %v1839
        %v2032 = vpack.c.b16 %v1844, %v1840
        %v2033 = vpack.c.b16 %v1849, %v1845
        %v2034 = vpack.c.b16 %v1850, %v1846
        %v2035 = vpack.c.b16 %v1851, %v1847
        %v2036 = vpack.c.b16 %v1852, %v1848
        %v2037 = vpack.c.b16 %v1857, %v1853
        %v2038 = vpack.c.b16 %v1858, %v1854
        %v2039 = vpack.c.b16 %v1859, %v1855
        %v2040 = vpack.c.b16 %v1860, %v1856
        %v2041 = vpack.c.b16 %v1865, %v1861
        %v2042 = vpack.c.b16 %v1866, %v1862
        %v2043 = vpack.c.b16 %v1867, %v1863
        %v2044 = vpack.c.b16 %v1868, %v1864
        %v2045 = vpack.c.b16 %v1873, %v1869
        %v2046 = vpack.c.b16 %v1874, %v1870
        %v2047 = vpack.c.b16 %v1875, %v1871
        %v2048 = vpack.c.b16 %v1876, %v1872
        %v2049 = vpack.c.b16 %v1881, %v1877
        %v2050 = vpack.c.b16 %v1882, %v1878
        %v2051 = vpack.c.b16 %v1883, %v1879
        %v2052 = vpack.c.b16 %v1884, %v1880
        %v2053 = vpack.c.b16 %v1889, %v1885
        %v2054 = vpack.c.b16 %v1890, %v1886
        %v2055 = vpack.c.b16 %v1891, %v1887
        %v2056 = vpack.c.b16 %v1892, %v1888
        %v2057 = vpack.c.b16 %v1897, %v1893
        %v2058 = vpack.c.b16 %v1898, %v1894
        %v2059 = vpack.c.b16 %v1899, %v1895
        %v2060 = vpack.c.b16 %v1900, %v1896
        %v2061 = vpack.c.b16 %v1905, %v1901
        %v2062 = vpack.c.b16 %v1906, %v1902
        %v2063 = vpack.c.b16 %v1907, %v1903
        %v2064 = vpack.c.b16 %v1908, %v1904
        %v2065 = vpack.c.b16 %v1913, %v1909
        %v2066 = vpack.c.b16 %v1914, %v1910
        %v2067 = vpack.c.b16 %v1915, %v1911
        %v2068 = vpack.c.b16 %v1916, %v1912
        %v2069 = vpack.c.b16 %v1921, %v1917
        %v2070 = vpack.c.b16 %v1922, %v1918
        %v2071 = vpack.c.b16 %v1923, %v1919
        %v2072 = vpack.c.b16 %v1924, %v1920
        %v2073 = vpack.c.b16 %v1929, %v1925
        %v2074 = vpack.c.b16 %v1930, %v1926
        %v2075 = vpack.c.b16 %v1931, %v1927
        %v2076 = vpack.c.b16 %v1932, %v1928
        %v2077 = vpack.c.b16 %v1937, %v1933
        %v2078 = vpack.c.b16 %v1938, %v1934
        %v2079 = vpack.c.b16 %v1939, %v1935
        %v2080 = vpack.c.b16 %v1940, %v1936
        %v2081 = vpack.c.b16 %v1945, %v1941
        %v2082 = vpack.c.b16 %v1946, %v1942
        %v2083 = vpack.c.b16 %v1947, %v1943
        %v2084 = vpack.c.b16 %v1948, %v1944
        %v2085 = vpack.c.b16 %v1953, %v1949
        %v2086 = vpack.c.b16 %v1954, %v1950
        %v2087 = vpack.c.b16 %v1955, %v1951
        %v2088 = vpack.c.b16 %v1956, %v1952
        %v2089 = vpack.c.b16 %v1961, %v1957
        %v2090 = vpack.c.b16 %v1962, %v1958
        %v2091 = vpack.c.b16 %v1963, %v1959
        %v2092 = vpack.c.b16 %v1964, %v1960
        %v2093 = vpack.c.b16 %v1969, %v1965
        %v2094 = vpack.c.b16 %v1970, %v1966
        %v2095 = vpack.c.b16 %v1971, %v1967
        %v2096 = vpack.c.b16 %v1972, %v1968
        %v2097 = vpack.c.b16 %v1977, %v1973
        %v2098 = vpack.c.b16 %v1978, %v1974
        %v2099 = vpack.c.b16 %v1979, %v1975
        %v2100 = vpack.c.b16 %v1980, %v1976
        %v2101 = vpack.c.b16 %v1985, %v1981
        %v2102 = vpack.c.b16 %v1986, %v1982
        %v2103 = vpack.c.b16 %v1987, %v1983
        %v2104 = vpack.c.b16 %v1988, %v1984
        %v2105 = vpack.c.b16 %v1993, %v1989
        %v2106 = vpack.c.b16 %v1994, %v1990
        %v2107 = vpack.c.b16 %v1995, %v1991
        %v2108 = vpack.c.b16 %v1996, %v1992
        %v2109 = vpack.c.b16 %v2001, %v1997
        %v2110 = vpack.c.b16 %v2002, %v1998
        %v2111 = vpack.c.b16 %v2003, %v1999
        %v2112 = vpack.c.b16 %v2004, %v2000
        %vm2221 = vcmask 392192
        %v2223 = vsel %vm2221, %v1677, 0
        %2225 = vmatpush.bf16.msra.mxu0 %v2033
        %2226 = vmatpush.bf16.msra.mxu0 %v2029
        %2227 = vmatpush.bf16.msra.mxu0 %v2025
        %2228 = vmatpush.bf16.msra.mxu0 %v2021
        %2229 = vmatpush.bf16.msra.mxu0 %v2017
        %2230 = vmatpush.bf16.msra.mxu0 %v2013
        %2231 = vmatpush.bf16.msra.mxu0 %v2009
        %2232 = vmatpush.bf16.msra.mxu0 %v2005
        %2233 = vmatmul.bf16.gmra.mxu0 %v1674
        %v2234 = vpop.f32.mrf.mxu0
        %v2235 = vadd.f32 0.0, %v2234
        %v2236 = vpop.f32.mrf.mxu0
        %2237 = vdwg.mxu0
        %2238 = vmatpush.bf16.msra.mxu0 %v2065
        %2239 = vmatpush.bf16.msra.mxu0 %v2061
        %2240 = vmatpush.bf16.msra.mxu0 %v2057
        %2241 = vmatpush.bf16.msra.mxu0 %v2053
        %2242 = vmatpush.bf16.msra.mxu0 %v2049
        %2243 = vmatpush.bf16.msra.mxu0 %v2045
        %2244 = vmatpush.bf16.msra.mxu0 %v2041
        %2245 = vmatpush.bf16.msra.mxu0 %v2037
        %2246 = vmatmul.bf16.gmra.mxu0 %v1675
        %v2247 = vpop.f32.mrf.mxu0
        %v2248 = vadd.f32 %v2235, %v2247
        %v2249 = vpop.f32.mrf.mxu0
        %2250 = vdwg.mxu0
        %2251 = vmatpush.bf16.msra.mxu0 %v2097
        %2252 = vmatpush.bf16.msra.mxu0 %v2093
        %2253 = vmatpush.bf16.msra.mxu0 %v2089
        %2254 = vmatpush.bf16.msra.mxu0 %v2085
        %2255 = vmatpush.bf16.msra.mxu0 %v2081
        %2256 = vmatpush.bf16.msra.mxu0 %v2077
        %2257 = vmatpush.bf16.msra.mxu0 %v2073
        %2258 = vmatpush.bf16.msra.mxu0 %v2069
        %2259 = vmatmul.bf16.gmra.mxu0 %v1676
        %v2260 = vpop.f32.mrf.mxu0
        %v2261 = vadd.f32 %v2248, %v2260
        %v2262 = vpop.f32.mrf.mxu0
        %2263 = vdwg.mxu0
        %2264 = vmatpush.bf16.msra.mxu0 0
        %2265 = vmatpush.bf16.msra.mxu0 0
        %2266 = vmatpush.bf16.msra.mxu0 0
        %2267 = vmatpush.bf16.msra.mxu0 0
        %2268 = vmatpush.bf16.msra.mxu0 0
        %2269 = vmatpush.bf16.msra.mxu0 %v2109
        %2270 = vmatpush.bf16.msra.mxu0 %v2105
        %2271 = vmatpush.bf16.msra.mxu0 %v2101
        %2272 = vmatmul.bf16.gmra.mxu0 %v2223
        %v2273 = vpop.f32.mrf.mxu0
        %v2274 = vadd.f32 %v2261, %v2273
        %v2275 = vpop.f32.mrf.mxu0
        %2276 = vdwg.mxu0
        %2277 = vmatpush.bf16.msra.mxu0 %v2034
        %2278 = vmatpush.bf16.msra.mxu0 %v2030
        %2279 = vmatpush.bf16.msra.mxu0 %v2026
        %2280 = vmatpush.bf16.msra.mxu0 %v2022
        %2281 = vmatpush.bf16.msra.mxu0 %v2018
        %2282 = vmatpush.bf16.msra.mxu0 %v2014
        %2283 = vmatpush.bf16.msra.mxu0 %v2010
        %2284 = vmatpush.bf16.msra.mxu0 %v2006
        %2285 = vmatmul.bf16.gmra.mxu0 %v1674
        %v2286 = vpop.f32.mrf.mxu0
        %v2287 = vadd.f32 0.0, %v2286
        %v2288 = vpop.f32.mrf.mxu0
        %2289 = vdwg.mxu0
        %2290 = vmatpush.bf16.msra.mxu0 %v2066
        %2291 = vmatpush.bf16.msra.mxu0 %v2062
        %2292 = vmatpush.bf16.msra.mxu0 %v2058
        %2293 = vmatpush.bf16.msra.mxu0 %v2054
        %2294 = vmatpush.bf16.msra.mxu0 %v2050
        %2295 = vmatpush.bf16.msra.mxu0 %v2046
        %2296 = vmatpush.bf16.msra.mxu0 %v2042
        %2297 = vmatpush.bf16.msra.mxu0 %v2038
        %2298 = vmatmul.bf16.gmra.mxu0 %v1675
        %v2299 = vpop.f32.mrf.mxu0
        %v2300 = vadd.f32 %v2287, %v2299
        %v2301 = vpop.f32.mrf.mxu0
        %2302 = vdwg.mxu0
        %2303 = vmatpush.bf16.msra.mxu0 %v2098
        %2304 = vmatpush.bf16.msra.mxu0 %v2094
        %2305 = vmatpush.bf16.msra.mxu0 %v2090
        %2306 = vmatpush.bf16.msra.mxu0 %v2086
        %2307 = vmatpush.bf16.msra.mxu0 %v2082
        %2308 = vmatpush.bf16.msra.mxu0 %v2078
        %2309 = vmatpush.bf16.msra.mxu0 %v2074
        %2310 = vmatpush.bf16.msra.mxu0 %v2070
        %2311 = vmatmul.bf16.gmra.mxu0 %v1676
        %v2312 = vpop.f32.mrf.mxu0
        %v2313 = vadd.f32 %v2300, %v2312
        %v2314 = vpop.f32.mrf.mxu0
        %2315 = vdwg.mxu0
        %2316 = vmatpush.bf16.msra.mxu0 0
        %2317 = vmatpush.bf16.msra.mxu0 0
        %2318 = vmatpush.bf16.msra.mxu0 0
        %2319 = vmatpush.bf16.msra.mxu0 0
        %2320 = vmatpush.bf16.msra.mxu0 0
        %2321 = vmatpush.bf16.msra.mxu0 %v2110
        %2322 = vmatpush.bf16.msra.mxu0 %v2106
        %2323 = vmatpush.bf16.msra.mxu0 %v2102
        %2324 = vmatmul.bf16.gmra.mxu0 %v2223
        %v2325 = vpop.f32.mrf.mxu0
        %v2326 = vadd.f32 %v2313, %v2325
        %v2327 = vpop.f32.mrf.mxu0
        %2328 = vdwg.mxu0
        %2329 = vmatpush.bf16.msra.mxu0 %v2035
        %2330 = vmatpush.bf16.msra.mxu0 %v2031
        %2331 = vmatpush.bf16.msra.mxu0 %v2027
        %2332 = vmatpush.bf16.msra.mxu0 %v2023
        %2333 = vmatpush.bf16.msra.mxu0 %v2019
        %2334 = vmatpush.bf16.msra.mxu0 %v2015
        %2335 = vmatpush.bf16.msra.mxu0 %v2011
        %2336 = vmatpush.bf16.msra.mxu0 %v2007
        %2337 = vmatmul.bf16.gmra.mxu0 %v1674
        %v2338 = vpop.f32.mrf.mxu0
        %v2339 = vadd.f32 0.0, %v2338
        %v2340 = vpop.f32.mrf.mxu0
        %2341 = vdwg.mxu0
        %2342 = vmatpush.bf16.msra.mxu0 %v2067
        %2343 = vmatpush.bf16.msra.mxu0 %v2063
        %2344 = vmatpush.bf16.msra.mxu0 %v2059
        %2345 = vmatpush.bf16.msra.mxu0 %v2055
        %2346 = vmatpush.bf16.msra.mxu0 %v2051
        %2347 = vmatpush.bf16.msra.mxu0 %v2047
        %2348 = vmatpush.bf16.msra.mxu0 %v2043
        %2349 = vmatpush.bf16.msra.mxu0 %v2039
        %2350 = vmatmul.bf16.gmra.mxu0 %v1675
        %v2351 = vpop.f32.mrf.mxu0
        %v2352 = vadd.f32 %v2339, %v2351
        %v2353 = vpop.f32.mrf.mxu0
        %2354 = vdwg.mxu0
        %2355 = vmatpush.bf16.msra.mxu0 %v2099
        %2356 = vmatpush.bf16.msra.mxu0 %v2095
        %2357 = vmatpush.bf16.msra.mxu0 %v2091
        %2358 = vmatpush.bf16.msra.mxu0 %v2087
        %2359 = vmatpush.bf16.msra.mxu0 %v2083
        %2360 = vmatpush.bf16.msra.mxu0 %v2079
        %2361 = vmatpush.bf16.msra.mxu0 %v2075
        %2362 = vmatpush.bf16.msra.mxu0 %v2071
        %2363 = vmatmul.bf16.gmra.mxu0 %v1676
        %v2364 = vpop.f32.mrf.mxu0
        %v2365 = vadd.f32 %v2352, %v2364
        %v2366 = vpop.f32.mrf.mxu0
        %2367 = vdwg.mxu0
        %2368 = vmatpush.bf16.msra.mxu0 0
        %2369 = vmatpush.bf16.msra.mxu0 0
        %2370 = vmatpush.bf16.msra.mxu0 0
        %2371 = vmatpush.bf16.msra.mxu0 0
        %2372 = vmatpush.bf16.msra.mxu0 0
        %2373 = vmatpush.bf16.msra.mxu0 %v2111
        %2374 = vmatpush.bf16.msra.mxu0 %v2107
        %2375 = vmatpush.bf16.msra.mxu0 %v2103
        %2376 = vmatmul.bf16.gmra.mxu0 %v2223
        %v2377 = vpop.f32.mrf.mxu0
        %v2378 = vadd.f32 %v2365, %v2377
        %v2379 = vpop.f32.mrf.mxu0
        %2380 = vdwg.mxu0
        %2381 = vmatpush.bf16.msra.mxu0 %v2036
        %2382 = vmatpush.bf16.msra.mxu0 %v2032
        %2383 = vmatpush.bf16.msra.mxu0 %v2028
        %2384 = vmatpush.bf16.msra.mxu0 %v2024
        %2385 = vmatpush.bf16.msra.mxu0 %v2020
        %2386 = vmatpush.bf16.msra.mxu0 %v2016
        %2387 = vmatpush.bf16.msra.mxu0 %v2012
        %2388 = vmatpush.bf16.msra.mxu0 %v2008
        %2389 = vmatmul.bf16.gmra.mxu0 %v1674
        %v2390 = vpop.f32.mrf.mxu0
        %v2391 = vadd.f32 0.0, %v2390
        %v2392 = vpop.f32.mrf.mxu0
        %2393 = vdwg.mxu0
        %2394 = vmatpush.bf16.msra.mxu0 %v2068
        %2395 = vmatpush.bf16.msra.mxu0 %v2064
        %2396 = vmatpush.bf16.msra.mxu0 %v2060
        %2397 = vmatpush.bf16.msra.mxu0 %v2056
        %2398 = vmatpush.bf16.msra.mxu0 %v2052
        %2399 = vmatpush.bf16.msra.mxu0 %v2048
        %2400 = vmatpush.bf16.msra.mxu0 %v2044
        %2401 = vmatpush.bf16.msra.mxu0 %v2040
        %2402 = vmatmul.bf16.gmra.mxu0 %v1675
        %v2403 = vpop.f32.mrf.mxu0
        %v2404 = vadd.f32 %v2391, %v2403
        %v2405 = vpop.f32.mrf.mxu0
        %2406 = vdwg.mxu0
        %2407 = vmatpush.bf16.msra.mxu0 %v2100
        %2408 = vmatpush.bf16.msra.mxu0 %v2096
        %2409 = vmatpush.bf16.msra.mxu0 %v2092
        %2410 = vmatpush.bf16.msra.mxu0 %v2088
        %2411 = vmatpush.bf16.msra.mxu0 %v2084
        %2412 = vmatpush.bf16.msra.mxu0 %v2080
        %2413 = vmatpush.bf16.msra.mxu0 %v2076
        %2414 = vmatpush.bf16.msra.mxu0 %v2072
        %2415 = vmatmul.bf16.gmra.mxu0 %v1676
        %v2416 = vpop.f32.mrf.mxu0
        %v2417 = vadd.f32 %v2404, %v2416
        %v2418 = vpop.f32.mrf.mxu0
        %2419 = vdwg.mxu0
        %2420 = vmatpush.bf16.msra.mxu0 0
        %2421 = vmatpush.bf16.msra.mxu0 0
        %2422 = vmatpush.bf16.msra.mxu0 0
        %2423 = vmatpush.bf16.msra.mxu0 0
        %2424 = vmatpush.bf16.msra.mxu0 0
        %2425 = vmatpush.bf16.msra.mxu0 %v2112
        %2426 = vmatpush.bf16.msra.mxu0 %v2108
        %2427 = vmatpush.bf16.msra.mxu0 %v2104
        %2428 = vmatmul.bf16.gmra.mxu0 %v2223
        %v2429 = vpop.f32.mrf.mxu0
        %v2430 = vadd.f32 %v2417, %v2429
        %v2431 = vpop.f32.mrf.mxu0
        %2432 = vdwg.mxu0
        %v2433 = vpack.c.bf16 %v2326, %v2274
        %v2434 = vpack.c.bf16 %v2430, %v2378
        %2435 = vst [vmem:[%s285] sm:$0xff] %v2433
        %2436 = vst [vmem:[%s285 + $0x8] sm:$0xff] %v2434
        %v2437 = vld [vmem:[%s285] sm:$0xff]
        %v2438 = vld [vmem:[%s285 + $0x8] sm:$0xff]
        %v2439 = vunpack.c.l.bf16 %v2437
        %v2440 = vunpack.c.h.bf16 %v2437
        %v2441 = vunpack.c.l.bf16 %v2438
        %v2442 = vunpack.c.h.bf16 %v2438
        %v2443 = vld [vmem:[%s257] sm:$0xf]
        %v2445 = vperm.slane %v2443, 0
        %v2446 = vperm.slane %v2443, 1
        %v2447 = vperm.slane %v2443, 2
        %v2448 = vperm.slane %v2443, 3
        %v2453 = vmul.f32 %v2439, %v2445
        %v2454 = vmul.f32 %v2440, %v2446
        %v2455 = vmul.f32 %v2441, %v2447
        %v2456 = vmul.f32 %v2442, %v2448
        %v2457 = vadd.f32 %v2453, %v2454
        %v2458 = vadd.f32 %v2457, %v2455
        %v2459 = vadd.f32 %v2458, %v2456
        %2460 = vadd.xlane.f32.xlu0 %v2459
        %v2461 = vpop.xlane.xlu0 %2460
        %vm2462 = vcmask 7168
        %2463 = vst.msk [vmem:[%s305] sm:$0xff] %vm2462, %v2461
        %v2464 = vmul.f32 %v2453, %v2453
        %v2465 = vmul.f32 %v2454, %v2454
        %v2466 = vmul.f32 %v2455, %v2455
        %v2467 = vmul.f32 %v2456, %v2456
        %v2468 = vadd.f32 %v2464, %v2465
        %v2469 = vadd.f32 %v2468, %v2466
        %v2470 = vadd.f32 %v2469, %v2467
        %2471 = vadd.xlane.f32.xlu0 %v2470
        %v2472 = vpop.xlane.xlu0 %2471
        %vm2473 = vcmask 15368
        %2474 = vst.msk [vmem:[%s305] sm:$0xff] %vm2473, %v2472
        %s2475 = sand.u32 %s118, 1
        %s2476 = scalar_lea.sflag [#allocation6], %s2475
        %s2477 = sand.u32 %s118, 1
        %s2478 = smul.addr %s2477, 16
        %s2479 = scalar_lea.vmem [#allocation10], %s2478
        %p2480 = scmp.lt.s32.totalorder %s27, 1
        %s2481 = scalar_select %p2480, %s27, 1
        %p2482 = scmp.lt.s32.totalorder %s28, 1
        %s2483 = scalar_select %p2482, %s28, 1
        %s2484 = smul.addr %s2481, 2
        %s2485 = sadd.s32 %s2483, %s2484
        %s2486 = smul.addr %s2485, 8
        %s2487 = scalar_lea.vmem %s4, %s2486
        // Predicated region
        $region45: #{tpu_custom_call.1} parent=31 // pred_check
          %p2488 = pneg %p128
        $region46: #{tpu_custom_call.1} parent=31 // pred_check_branch
          %2490 = sbr.rel (%p2488) target = $region48
        $region47: #{tpu_custom_call.1} parent=31 // pred_region
          %s2491 = smul.u32 4, %s28
          %2493 = vsyncadd %s2476, 0
          %s2494 = smul.addr %s27, 8
          %s2495 = sadd.s32 %s2491, %s2494
          %s2496 = smul.addr %s2495, 4
          %s2497 = scalar_lea.hbm %s3, %s2496
          %s2499 = sshll.u32 %s2479, 4
          %s2500 = int_to_ptr.vmem [resolvable:$true] %s2499
          %s2501 = sshll.u32 %s2497, 4
          %s2502 = int_to_ptr.hbm [resolvable:$true] %s2501
          %2504 = dma.vmem_to_hbm [thread:$0]  %s2500, 256, %s2502, %s2476
        $region48: #{tpu_custom_call.1} parent=31 // pred_fallthru
          _
        // Predicated region
        $region49: #{tpu_custom_call.1} parent=31 // pred_check
          %p2505 = pneg %p156
        $region50: #{tpu_custom_call.1} parent=31 // pred_check_branch
          %2507 = sbr.rel (%p2505) target = $region52
        $region51: #{tpu_custom_call.1} parent=31 // pred_region
          _
        $region52: #{tpu_custom_call.1} parent=31 // pred_fallthru
          _
      $region32: #{tpu_custom_call.1} parent=5 // pred_fallthru
        _
      %p2508 = scmp.le.s32.totalorder 2, %s18
      // Predicated region
      $region53: #{tpu_custom_call.1} parent=5 // pred_check
        %p2509 = pneg %p2508
      $region54: #{tpu_custom_call.1} parent=5 // pred_check_branch
        %2511 = sbr.rel (%p2509) target = $region56
      $region55: #{tpu_custom_call.1} parent=5 // pred_region
        %s2512 = ssub.s32 %s18, 2
        // Predicated region
        $region57: #{tpu_custom_call.1} parent=55 // pred_check
          %p2513 = pneg %p134
        $region58: #{tpu_custom_call.1} parent=55 // pred_check_branch
          %2515 = sbr.rel (%p2513) target = $region60
        $region59: #{tpu_custom_call.1} parent=55 // pred_region
          %s2516 = sand.u32 %s119, 1
          %s2517 = scalar_lea.sflag [#allocation6], %s2516
          %s2518 = sand.u32 %s119, 1
          %s2519 = smul.addr %s2518, 16
          %s2520 = scalar_lea.vmem [#allocation10], %s2519
          %2522 = dma.done %s2517, 256
        $region60: #{tpu_custom_call.1} parent=55 // pred_fallthru
          _
        // Predicated region
        $region61: #{tpu_custom_call.1} parent=55 // pred_check
          %p2523 = pneg %p162
        $region62: #{tpu_custom_call.1} parent=55 // pred_check_branch
          %2525 = sbr.rel (%p2523) target = $region64
        $region63: #{tpu_custom_call.1} parent=55 // pred_region
          %p2526 = scmp.lt.s32.totalorder %s29, 1
          %s2527 = scalar_select %p2526, %s29, 1
          %p2528 = scmp.lt.s32.totalorder %s30, 1
          %s2529 = scalar_select %p2528, %s30, 1
          %s2530 = smul.addr %s2527, 2
          %s2531 = sadd.s32 %s2529, %s2530
          %s2532 = smul.addr %s2531, 8
          %s2533 = scalar_lea.vmem %s4, %s2532
        $region64: #{tpu_custom_call.1} parent=55 // pred_fallthru
          _
      $region56: #{tpu_custom_call.1} parent=5 // pred_fallthru
        _
    $region6: #{tpu_custom_call.1} parent=1 // loop_footer
      %s22 = sadd.s32 1, %s18
    $region7: #{tpu_custom_call.1} parent=1 // loop_footer_branch
      %17 = sbr.rel target = $region3
    $region8: #{tpu_custom_call.1} parent=1 // loop_exit
      _
    %2534 = vsyncpa [#allocation5], 1
    %s2535 = scalar_lea.sflag [#allocation5], 1
    %2536 = vsyncpa %s2535, 1
    %2537 = vsyncpa [#allocation8], 1
    %2538 = vsyncpa [#allocation6], 1
    %s2539 = scalar_lea.sflag [#allocation6], 1
    %2540 = vsyncpa %s2539, 1

</llo_original>
